<compile_context>
chip_gen: v7x
topology: tpu7x:2x2x1
jax: 0.10.0
libtpu: 0.0.40
codegen_flags: <defaults>
</compile_context>

<pallas_src>
import jax
import jax.numpy as jnp
from jax.experimental import pallas as pl
from jax.experimental.pallas import tpu as pltpu


# ---------------------------------------------------------------------------
# Kernel
# ---------------------------------------------------------------------------
def regnet_kernel(x_ref, w1_ref, b1_ref, w2_ref, b2_ref, w3_ref, b3_ref, o_ref):
    x = x_ref[...]                                                   # (1, TB) f32

    # Layer 1: Linear(1, H) -> ReLU.  K=1 contraction == broadcast outer product
    # on the VPU (no MXU push/pop for a depth-1 matmul).
    h1 = jnp.maximum(w1_ref[...] * x + b1_ref[...], 0.0)            # (Hp, TB) f32

    # Layer 2: Linear(H, H) -> ReLU.  The only real matmul: bf16 operands,
    # f32 accumulation on the MXU.
    h2 = jnp.dot(w2_ref[...], h1.astype(jnp.bfloat16),
                 preferred_element_type=jnp.float32)                 # (Hp, TB) f32
    h2 = jnp.maximum(h2 + b2_ref[...], 0.0)

    # Layer 3: Linear(H, 1).  Single output column -> VPU multiply + sublane
    # reduction (XLU) instead of an MXU matmul with 1 useful column.
    y = jnp.sum(h2 * w3_ref[...], axis=0, keepdims=True) + b3_ref[0, 0]  # (1, TB)

    o_ref[...] = y.astype(o_ref.dtype)


# ---------------------------------------------------------------------------
# Wrapper
# ---------------------------------------------------------------------------
def regnet_forward(x, kparams, *, tile_b=512):
    """x: (N, 1) float32 (PyTorch layout). kparams: output of prep_kernel_params."""
    N = x.shape[0]
    Hp = kparams["w1"].shape[0]

    # Batch lives on the lane axis: reshape (N,1) -> (1, N) and zero-pad N to a
    # multiple of tile_b (padded columns are sliced off afterwards).
    Np = ((N + tile_b - 1) // tile_b) * tile_b
    x_row = jnp.zeros((1, Np), jnp.float32).at[0, :N].set(
        x.reshape(-1).astype(jnp.float32))

    grid = (Np // tile_b,)

    in_specs = [
        pl.BlockSpec((1, tile_b), lambda i: (0, i)),     # x   (1, Np) lane-dense
        pl.BlockSpec((Hp, 1), lambda i: (0, 0)),         # w1  column (Hp, 1)
        pl.BlockSpec((Hp, 1), lambda i: (0, 0)),         # b1  column (Hp, 1)
        pl.BlockSpec((Hp, Hp), lambda i: (0, 0)),        # w2  (out,in), bf16
        pl.BlockSpec((Hp, 1), lambda i: (0, 0)),         # b2  column (Hp, 1)
        pl.BlockSpec((Hp, 1), lambda i: (0, 0)),         # w3  column (Hp, 1)
        pl.BlockSpec(memory_space=pltpu.MemorySpace.SMEM),  # b3 scalar (1,1)
    ]
    out_specs = pl.BlockSpec((1, tile_b), lambda i: (0, i))

    out_row = pl.pallas_call(
        regnet_kernel,
        out_shape=jax.ShapeDtypeStruct((1, Np), jnp.float32),
        grid=grid,
        in_specs=in_specs,
        out_specs=out_specs,
        compiler_params=pltpu.CompilerParams(
            dimension_semantics=("parallel",)   # batch axis shards across TCs (v7x)
        ),
    )(x_row, kparams["w1"], kparams["b1"], kparams["w2"],
      kparams["b2"], kparams["w3"], kparams["b3"])

    # (1, Np) -> (N, 1): contiguous slice + reshape (layout plumbing only).
    return out_row[0, :N].reshape(N, 1)


# ---------------------------------------------------------------------------
# Parameters (PyTorch-equivalent init + kernel-layout preparation)
# ---------------------------------------------------------------------------
def init_raw_params(key, hiddennum):
    """Matches RegNet._initialize_weights: W ~ N(0, 1/sqrt(fan_in)), b = 0.
    Stored in PyTorch (out_features, in_features) layout."""
    H = hiddennum
    k1, k2, k3 = jax.random.split(key, 3)
    return {
        "W1": jax.random.normal(k1, (H, 1), jnp.float32),                       # fan_in=1
        "b1": jnp.zeros((H,), jnp.float32),
        "W2": jax.random.normal(k2, (H, H), jnp.float32) / jnp.sqrt(float(H)),
        "b2": jnp.zeros((H,), jnp.float32),
        "W3": jax.random.normal(k3, (1, H), jnp.float32) / jnp.sqrt(float(H)),
        "b3": jnp.zeros((1,), jnp.float32),
    }


def prep_kernel_params(raw, pad_to=128):
    """Zero-pad hidden dim to a multiple of `pad_to` (exact no-op for the
    forward), lay weights out for the transposed (batch-on-lanes) kernel, and
    cast the (Hp,Hp) MXU weight to bf16."""
    H = raw["W1"].shape[0]
    Hp = -(-H // pad_to) * pad_to

    def pad_col(v):  # (H,) or (H,1) -> (Hp, 1) f32, zero-padded
        v = jnp.asarray(v, jnp.float32).reshape(-1, 1)
        return jnp.zeros((Hp, 1), jnp.float32).at[:H].set(v)

    w2 = jnp.zeros((Hp, Hp), jnp.float32).at[:H, :H].set(
        jnp.asarray(raw["W2"], jnp.float32))

    return {
        "w1": pad_col(raw["W1"]),                    # (Hp, 1) f32
        "b1": pad_col(raw["b1"]),                    # (Hp, 1) f32
        "w2": w2.astype(jnp.bfloat16),               # (Hp, Hp) bf16 (out, in)
        "b2": pad_col(raw["b2"]),                    # (Hp, 1) f32
        "w3": pad_col(raw["W3"].reshape(-1)),        # (Hp, 1) f32
        "b3": raw["b3"].reshape(1, 1).astype(jnp.float32),  # (1, 1) f32 -> SMEM
    }


def regnet_ref(x, raw):
    """Pure-f32 reference with PyTorch semantics: y = relu(x W1^T + b1) ..."""
    h1 = jnp.maximum(x @ raw["W1"].T + raw["b1"], 0.0)
    h2 = jnp.maximum(h1 @ raw["W2"].T + raw["b2"], 0.0)
    return h2 @ raw["W3"].T + raw["b3"]


# ---------------------------------------------------------------------------
# Demo / correctness check
# ---------------------------------------------------------------------------
if __name__ == "__main__":
    key = jax.random.PRNGKey(0)
    kx, kp = jax.random.split(key)

    H = 256    # small, MXU-aligned hidden size (module default 1000 -> padded to 1024)
    N = 1024   # batch of scalar inputs, PyTorch shape (N, 1)

    x = jax.random.normal(kx, (N, 1), jnp.float32)
    raw = init_raw_params(kp, H)
    kparams = prep_kernel_params(raw)

    out = regnet_forward(x, kparams, tile_b=256)   # grid of 4 parallel batch tiles
    out = jax.block_until_ready(out)

    ref = regnet_ref(x, raw)
    assert out.shape == (N, 1)
    # bf16 operands (f32 accumulation) on the middle layer only -> ~<1% deviation
    # from the pure-f32 module math.
    max_err = float(jnp.max(jnp.abs(out - ref)))
    assert jnp.allclose(out, ref, atol=5e-2, rtol=5e-2), max_err

    print("KERNEL_OK")
</pallas_src>

<mosaic_0001>
module attributes {stable_mosaic.version = 11 : i64} {
  func.func @regnet_kernel(%arg0: i32, %arg1: memref<1x256xf32, #tpu.memory_space<vmem>>, %arg2: memref<256x1xf32, #tpu.memory_space<vmem>>, %arg3: memref<256x1xf32, #tpu.memory_space<vmem>>, %arg4: memref<256x256xbf16, #tpu.memory_space<vmem>>, %arg5: memref<256x1xf32, #tpu.memory_space<vmem>>, %arg6: memref<256x1xf32, #tpu.memory_space<vmem>>, %arg7: memref<1x1xf32, #tpu.memory_space<smem>>, %arg8: memref<1x256xf32, #tpu.memory_space<vmem>>) attributes {dimension_semantics = [#tpu.dimension_semantics<parallel>], iteration_bounds = array<i64: 4>, scalar_prefetch = 0 : i64, scratch_operands = 0 : i64, tpu.core_type = #tpu.core_type<tc>, window_params = [{transform_indices = @transform_0, window_bounds = array<i64: 1, 256>}, {pipeline_mode = #tpu.pipeline_mode<synchronous>, transform_indices = @transform_1, window_bounds = array<i64: 256, 1>}, {pipeline_mode = #tpu.pipeline_mode<synchronous>, transform_indices = @transform_2, window_bounds = array<i64: 256, 1>}, {pipeline_mode = #tpu.pipeline_mode<synchronous>, transform_indices = @transform_3, window_bounds = array<i64: 256, 256>}, {pipeline_mode = #tpu.pipeline_mode<synchronous>, transform_indices = @transform_4, window_bounds = array<i64: 256, 1>}, {pipeline_mode = #tpu.pipeline_mode<synchronous>, transform_indices = @transform_5, window_bounds = array<i64: 256, 1>}, {transform_indices = @transform_6, window_bounds = array<i64: 1, 1>}, {transform_indices = @transform_7, window_bounds = array<i64: 1, 256>}]} {
    %c0 = arith.constant 0 : index
    %c0_0 = arith.constant 0 : index
    %0 = vector.load %arg1[%c0, %c0_0] : memref<1x256xf32, #tpu.memory_space<vmem>>, vector<1x256xf32>
    %c0_1 = arith.constant 0 : index
    %c0_2 = arith.constant 0 : index
    %1 = vector.load %arg2[%c0_1, %c0_2] : memref<256x1xf32, #tpu.memory_space<vmem>>, vector<256x1xf32>
    %2 = vector.broadcast %1 : vector<256x1xf32> to vector<256x256xf32>
    %3 = vector.broadcast %0 : vector<1x256xf32> to vector<256x256xf32>
    %4 = arith.mulf %2, %3 : vector<256x256xf32>
    %c0_3 = arith.constant 0 : index
    %c0_4 = arith.constant 0 : index
    %5 = vector.load %arg3[%c0_3, %c0_4] : memref<256x1xf32, #tpu.memory_space<vmem>>, vector<256x1xf32>
    %6 = vector.broadcast %5 : vector<256x1xf32> to vector<256x256xf32>
    %7 = arith.addf %4, %6 : vector<256x256xf32>
    %cst = arith.constant 0.000000e+00 : f32
    %8 = vector.broadcast %cst : f32 to vector<256x256xf32>
    %9 = arith.maximumf %7, %8 : vector<256x256xf32>
    %c0_5 = arith.constant 0 : index
    %c0_6 = arith.constant 0 : index
    %10 = vector.load %arg4[%c0_5, %c0_6] : memref<256x256xbf16, #tpu.memory_space<vmem>>, vector<256x256xbf16>
    %11 = arith.truncf %9 : vector<256x256xf32> to vector<256x256xbf16>
    %cst_7 = arith.constant dense<0.000000e+00> : vector<256x256xf32>
    %12 = tpu.matmul %10, %11, %cst_7 {dimension_numbers = #tpu.dot_dimension_numbers<[1], [0], [0], [1], [0, 0, 1, 1], [], []>} : vector<256x256xbf16>, vector<256x256xbf16>, vector<256x256xf32> -> vector<256x256xf32>
    %c0_8 = arith.constant 0 : index
    %c0_9 = arith.constant 0 : index
    %13 = vector.load %arg5[%c0_8, %c0_9] : memref<256x1xf32, #tpu.memory_space<vmem>>, vector<256x1xf32>
    %14 = vector.broadcast %13 : vector<256x1xf32> to vector<256x256xf32>
    %15 = arith.addf %12, %14 : vector<256x256xf32>
    %cst_10 = arith.constant 0.000000e+00 : f32
    %16 = vector.broadcast %cst_10 : f32 to vector<256x256xf32>
    %17 = arith.maximumf %15, %16 : vector<256x256xf32>
    %c0_11 = arith.constant 0 : index
    %c0_12 = arith.constant 0 : index
    %18 = vector.load %arg6[%c0_11, %c0_12] : memref<256x1xf32, #tpu.memory_space<vmem>>, vector<256x1xf32>
    %19 = vector.broadcast %18 : vector<256x1xf32> to vector<256x256xf32>
    %20 = arith.mulf %17, %19 : vector<256x256xf32>
    %cst_13 = arith.constant dense<0.000000e+00> : vector<256xf32>
    %21 = vector.multi_reduction <add>, %20, %cst_13 [0] : vector<256x256xf32> to vector<256xf32>
    %22 = vector.shape_cast %21 : vector<256xf32> to vector<1x256xf32>
    %c0_14 = arith.constant 0 : index
    %c0_15 = arith.constant 0 : index
    %23 = memref.load %arg7[%c0_14, %c0_15] : memref<1x1xf32, #tpu.memory_space<smem>>
    %24 = vector.broadcast %23 : f32 to vector<1x256xf32>
    %25 = arith.addf %22, %24 : vector<1x256xf32>
    %c0_16 = arith.constant 0 : index
    %c0_17 = arith.constant 0 : index
    %26 = vector.load %arg8[%c0_16, %c0_17] : memref<1x256xf32, #tpu.memory_space<vmem>>, vector<1x256xf32>
    tpu.vector_store %arg8[%c0_16, %c0_17], %25 {strides = array<i32>} : memref<1x256xf32, #tpu.memory_space<vmem>>, vector<1x256xf32>,
    return
  }
  func.func @transform_0(%arg0: i32) -> (i32, i32) {
    %c0_i32 = arith.constant 0 : i32
    %c0_i32_0 = arith.constant 0 : i32
    return %c0_i32, %arg0 : i32, i32
  }
  func.func @transform_1(%arg0: i32) -> (i32, i32) {
    %c0_i32 = arith.constant 0 : i32
    %c0_i32_0 = arith.constant 0 : i32
    %c0_i32_1 = arith.constant 0 : i32
    return %c0_i32, %c0_i32_0 : i32, i32
  }
  func.func @transform_2(%arg0: i32) -> (i32, i32) {
    %c0_i32 = arith.constant 0 : i32
    %c0_i32_0 = arith.constant 0 : i32
    %c0_i32_1 = arith.constant 0 : i32
    return %c0_i32, %c0_i32_0 : i32, i32
  }
  func.func @transform_3(%arg0: i32) -> (i32, i32) {
    %c0_i32 = arith.constant 0 : i32
    %c0_i32_0 = arith.constant 0 : i32
    %c0_i32_1 = arith.constant 0 : i32
    return %c0_i32, %c0_i32_0 : i32, i32
  }
  func.func @transform_4(%arg0: i32) -> (i32, i32) {
    %c0_i32 = arith.constant 0 : i32
    %c0_i32_0 = arith.constant 0 : i32
    %c0_i32_1 = arith.constant 0 : i32
    return %c0_i32, %c0_i32_0 : i32, i32
  }
  func.func @transform_5(%arg0: i32) -> (i32, i32) {
    %c0_i32 = arith.constant 0 : i32
    %c0_i32_0 = arith.constant 0 : i32
    %c0_i32_1 = arith.constant 0 : i32
    return %c0_i32, %c0_i32_0 : i32, i32
  }
  func.func @transform_6(%arg0: i32) -> (i32, i32) {
    %c0_i32 = arith.constant 0 : i32
    %c0_i32_0 = arith.constant 0 : i32
    %c0_i32_1 = arith.constant 0 : i32
    return %c0_i32, %c0_i32_0 : i32, i32
  }
  func.func @transform_7(%arg0: i32) -> (i32, i32) {
    %c0_i32 = arith.constant 0 : i32
    %c0_i32_0 = arith.constant 0 : i32
    return %c0_i32, %arg0 : i32, i32
  }
}

</mosaic_0001>

<llo_original>
// kernel: tpu_custom_call.1
$region0: #{tpu_custom_call.1}
  #allocation0 [shape = 'u32[]', space=smem, size = 0x4, offset = 0x4, fixed_abs, tag = 'smem constant byte address 0x4 - core index']
  #allocation1 [shape = 'u32[144,128]{1,0:T(1,128)}', space=vmem, size = 0x12000, scoped, tag = 'internal scratch']
  #allocation2 [shape = 'f32[1,1]{1,0:T(1,128)S(6)}', space=smem, size = 0x200, scoped, tag = 'scoped memory for tpu_custom_call.1']
  %s0 = inlined_call_operand.vmem [shape: f32[1,1024], index: 0, kind: input, shape index: {}]
  %s1 = inlined_call_operand.vmem [shape: f32[256,1], index: 1, kind: input, shape index: {}]
  %s2 = inlined_call_operand.vmem [shape: f32[256,1], index: 2, kind: input, shape index: {}]
  %s3 = inlined_call_operand.vmem [shape: bf16[256,256], index: 3, kind: input, shape index: {}]
  %s4 = inlined_call_operand.vmem [shape: f32[256,1], index: 4, kind: input, shape index: {}]
  %s5 = inlined_call_operand.vmem [shape: f32[256,1], index: 5, kind: input, shape index: {}]
  %s6 = inlined_call_operand.<no memory space> [shape: f32[1,1], index: 6, kind: input, shape index: {}]
  %s7 = inlined_call_operand.hbm [shape: f32[1,1024], index: 7, kind: output, shape index: {}]
  %s8 = sld [smem:[#allocation0]]
  $region61: #{tpu_custom_call.1} parent=0
    _
  %s10 = ssub.s32 1, %s8
  %s11 = scalar_select 0, %s10, %s8
  %12 = sst [smem:[#allocation2]] %s6
  $region1: #{tpu_custom_call.1} parent=0
    #allocation3 [shape = 'u8[2048]{0}', space=vmem, size = 0x800, scoped, tag = 'output window, operand 0']
    #allocation4 [shape = 's32[2]{0}', space=sflag, size = 0x8, scoped, tag = 'scoped memory for tpu_custom_call.1']
    %13 = vsyncpa [#allocation4], 0
    %s14 = scalar_lea.sflag [#allocation4], 1
    %15 = vsyncpa %s14, 0
    loop: start=0, step=1, limit=6
    $region2: #{tpu_custom_call.1} parent=1 // loop_pre_header
      _
    $region3: #{tpu_custom_call.1} parent=1 // loop_header
      %s17 = sphi 0, %s21
      %p18 = scmp.ge.s32.totalorder %s17, 6
      %s27 = sphi 0, %s29
      %s30 = sphi 0, %s27
      %s31 = sphi 0, %s30
      %s47 = sphi 0, %s31
      %s51 = sphi 0, %s51
      %s53 = sphi 0, %s51
      %s54 = sphi 0, %s53
      %s68 = sphi 0, %s54
      %s72 = sphi 0, %s72
      %s74 = sphi 0, %s72
      %s75 = sphi 0, %s74
      %s89 = sphi 0, %s75
      %s93 = sphi 0, %s93
      %s95 = sphi 0, %s93
      %s96 = sphi 0, %s95
      %s110 = sphi 0, %s96
      %s114 = sphi 0, %s114
      %s116 = sphi 0, %s114
      %s117 = sphi 0, %s116
      %s131 = sphi 0, %s117
      %s135 = sphi 0, %s135
      %s137 = sphi 0, %s135
      %s138 = sphi 0, %s137
      %s152 = sphi 0, %s138
      %s156 = sphi 0, %s156
      %s158 = sphi 0, %s156
      %s159 = sphi 0, %s158
      %s173 = sphi 0, %s159
      %s179 = sphi 0, %s181
      %s182 = sphi 0, %s179
      %s183 = sphi 0, %s182
      %s199 = sphi 0, %s183
    $region4: #{tpu_custom_call.1} parent=1 // loop_header_branch
      %20 = sbr.rel (%p18) target = $region8
    $region5: #{tpu_custom_call.1} parent=1 // loop_body
      %s22 = ssub.s32 %s17, 1
      %s23 = ssub.s32 %s17, 2
      %s24 = sadd.s32 %s17, 1
      %s25 = ssub.s32 %s17, %s24
      %p26 = scmp.eq.s32.totalorder %s25, 0
      %s28 = sadd.s32 %s27, 1
      %s29 = scalar_select %p26, %s27, %s28
      %p32 = pneg %p26
      %p33 = scmp.eq.s32.totalorder %s17, 3
      %p34 = por %p32, %p33
      %p35 = scmp.ne.s32.totalorder %s27, %s30
      %p36 = scmp.eq.s32.totalorder %s17, 0
      %p37 = por %p35, %p36
      %p38 = scmp.ne.s32.totalorder %s27, %s30
      %p39 = scmp.eq.s32.totalorder %s22, 3
      %p40 = por %p38, %p39
      %p41 = scmp.ne.s32.totalorder %s30, %s31
      %p42 = scmp.eq.s32.totalorder %s22, 0
      %p43 = por %p41, %p42
      %p44 = scmp.ne.s32.totalorder %s30, %s31
      %p45 = scmp.eq.s32.totalorder %s23, 3
      %p46 = por %p44, %p45
      %p48 = scmp.ne.s32.totalorder %s31, %s47
      %p49 = scmp.eq.s32.totalorder %s23, 0
      %p50 = por %p48, %p49
      %s52 = sadd.s32 %s51, 1
      %p55 = scmp.eq.s32.totalorder %s17, 3
      %p56 = scmp.ne.s32.totalorder %s51, %s53
      %p57 = scmp.eq.s32.totalorder %s17, 0
      %p58 = por %p56, %p57
      %p59 = scmp.ne.s32.totalorder %s51, %s53
      %p60 = scmp.eq.s32.totalorder %s22, 3
      %p61 = por %p59, %p60
      %p62 = scmp.ne.s32.totalorder %s53, %s54
      %p63 = scmp.eq.s32.totalorder %s22, 0
      %p64 = por %p62, %p63
      %p65 = scmp.ne.s32.totalorder %s53, %s54
      %p66 = scmp.eq.s32.totalorder %s23, 3
      %p67 = por %p65, %p66
      %p69 = scmp.ne.s32.totalorder %s54, %s68
      %p70 = scmp.eq.s32.totalorder %s23, 0
      %p71 = por %p69, %p70
      %s73 = sadd.s32 %s72, 1
      %p76 = scmp.eq.s32.totalorder %s17, 3
      %p77 = scmp.ne.s32.totalorder %s72, %s74
      %p78 = scmp.eq.s32.totalorder %s17, 0
      %p79 = por %p77, %p78
      %p80 = scmp.ne.s32.totalorder %s72, %s74
      %p81 = scmp.eq.s32.totalorder %s22, 3
      %p82 = por %p80, %p81
      %p83 = scmp.ne.s32.totalorder %s74, %s75
      %p84 = scmp.eq.s32.totalorder %s22, 0
      %p85 = por %p83, %p84
      %p86 = scmp.ne.s32.totalorder %s74, %s75
      %p87 = scmp.eq.s32.totalorder %s23, 3
      %p88 = por %p86, %p87
      %p90 = scmp.ne.s32.totalorder %s75, %s89
      %p91 = scmp.eq.s32.totalorder %s23, 0
      %p92 = por %p90, %p91
      %s94 = sadd.s32 %s93, 1
      %p97 = scmp.eq.s32.totalorder %s17, 3
      %p98 = scmp.ne.s32.totalorder %s93, %s95
      %p99 = scmp.eq.s32.totalorder %s17, 0
      %p100 = por %p98, %p99
      %p101 = scmp.ne.s32.totalorder %s93, %s95
      %p102 = scmp.eq.s32.totalorder %s22, 3
      %p103 = por %p101, %p102
      %p104 = scmp.ne.s32.totalorder %s95, %s96
      %p105 = scmp.eq.s32.totalorder %s22, 0
      %p106 = por %p104, %p105
      %p107 = scmp.ne.s32.totalorder %s95, %s96
      %p108 = scmp.eq.s32.totalorder %s23, 3
      %p109 = por %p107, %p108
      %p111 = scmp.ne.s32.totalorder %s96, %s110
      %p112 = scmp.eq.s32.totalorder %s23, 0
      %p113 = por %p111, %p112
      %s115 = sadd.s32 %s114, 1
      %p118 = scmp.eq.s32.totalorder %s17, 3
      %p119 = scmp.ne.s32.totalorder %s114, %s116
      %p120 = scmp.eq.s32.totalorder %s17, 0
      %p121 = por %p119, %p120
      %p122 = scmp.ne.s32.totalorder %s114, %s116
      %p123 = scmp.eq.s32.totalorder %s22, 3
      %p124 = por %p122, %p123
      %p125 = scmp.ne.s32.totalorder %s116, %s117
      %p126 = scmp.eq.s32.totalorder %s22, 0
      %p127 = por %p125, %p126
      %p128 = scmp.ne.s32.totalorder %s116, %s117
      %p129 = scmp.eq.s32.totalorder %s23, 3
      %p130 = por %p128, %p129
      %p132 = scmp.ne.s32.totalorder %s117, %s131
      %p133 = scmp.eq.s32.totalorder %s23, 0
      %p134 = por %p132, %p133
      %s136 = sadd.s32 %s135, 1
      %p139 = scmp.eq.s32.totalorder %s17, 3
      %p140 = scmp.ne.s32.totalorder %s135, %s137
      %p141 = scmp.eq.s32.totalorder %s17, 0
      %p142 = por %p140, %p141
      %p143 = scmp.ne.s32.totalorder %s135, %s137
      %p144 = scmp.eq.s32.totalorder %s22, 3
      %p145 = por %p143, %p144
      %p146 = scmp.ne.s32.totalorder %s137, %s138
      %p147 = scmp.eq.s32.totalorder %s22, 0
      %p148 = por %p146, %p147
      %p149 = scmp.ne.s32.totalorder %s137, %s138
      %p150 = scmp.eq.s32.totalorder %s23, 3
      %p151 = por %p149, %p150
      %p153 = scmp.ne.s32.totalorder %s138, %s152
      %p154 = scmp.eq.s32.totalorder %s23, 0
      %p155 = por %p153, %p154
      %s157 = sadd.s32 %s156, 1
      %p160 = scmp.eq.s32.totalorder %s17, 3
      %p161 = scmp.ne.s32.totalorder %s156, %s158
      %p162 = scmp.eq.s32.totalorder %s17, 0
      %p163 = por %p161, %p162
      %p164 = scmp.ne.s32.totalorder %s156, %s158
      %p165 = scmp.eq.s32.totalorder %s22, 3
      %p166 = por %p164, %p165
      %p167 = scmp.ne.s32.totalorder %s158, %s159
      %p168 = scmp.eq.s32.totalorder %s22, 0
      %p169 = por %p167, %p168
      %p170 = scmp.ne.s32.totalorder %s158, %s159
      %p171 = scmp.eq.s32.totalorder %s23, 3
      %p172 = por %p170, %p171
      %p174 = scmp.ne.s32.totalorder %s159, %s173
      %p175 = scmp.eq.s32.totalorder %s23, 0
      %p176 = por %p174, %p175
      %s177 = ssub.s32 %s17, %s24
      %p178 = scmp.eq.s32.totalorder %s177, 0
      %s180 = sadd.s32 %s179, 1
      %s181 = scalar_select %p178, %s179, %s180
      %p184 = pneg %p178
      %p185 = scmp.eq.s32.totalorder %s17, 3
      %p186 = por %p184, %p185
      %p187 = scmp.ne.s32.totalorder %s179, %s182
      %p188 = scmp.eq.s32.totalorder %s17, 0
      %p189 = por %p187, %p188
      %p190 = scmp.ne.s32.totalorder %s179, %s182
      %p191 = scmp.eq.s32.totalorder %s22, 3
      %p192 = por %p190, %p191
      %p193 = scmp.ne.s32.totalorder %s182, %s183
      %p194 = scmp.eq.s32.totalorder %s22, 0
      %p195 = por %p193, %p194
      %p196 = scmp.ne.s32.totalorder %s182, %s183
      %p197 = scmp.eq.s32.totalorder %s23, 3
      %p198 = por %p196, %p197
      %p200 = scmp.ne.s32.totalorder %s183, %s199
      %p201 = scmp.eq.s32.totalorder %s23, 0
      %p202 = por %p200, %p201
      %p203 = scmp.le.s32.totalorder 1, %s17
      %p204 = scmp.lt.s32.totalorder %s17, 5
      %p205 = pnand %p203, %p204
      %p206 = pneg %p205
      // Predicated region
      $region9: #{tpu_custom_call.1} parent=5 // pred_check
        _
      $region10: #{tpu_custom_call.1} parent=5 // pred_check_branch
        %208 = sbr.rel (%p205) target = $region12
      $region11: #{tpu_custom_call.1} parent=5 // pred_region
        %s209 = ssub.s32 %s17, 1
        // Predicated region
        $region13: #{tpu_custom_call.1} parent=11 // pred_check
          %p210 = pneg %p64
        $region14: #{tpu_custom_call.1} parent=11 // pred_check_branch
          %212 = sbr.rel (%p210) target = $region16
        $region15: #{tpu_custom_call.1} parent=11 // pred_region
          _
        $region16: #{tpu_custom_call.1} parent=11 // pred_fallthru
          _
        // Predicated region
        $region17: #{tpu_custom_call.1} parent=11 // pred_check
          %p213 = pneg %p85
        $region18: #{tpu_custom_call.1} parent=11 // pred_check_branch
          %215 = sbr.rel (%p213) target = $region20
        $region19: #{tpu_custom_call.1} parent=11 // pred_region
          _
        $region20: #{tpu_custom_call.1} parent=11 // pred_fallthru
          _
        // Predicated region
        $region21: #{tpu_custom_call.1} parent=11 // pred_check
          %p216 = pneg %p106
        $region22: #{tpu_custom_call.1} parent=11 // pred_check_branch
          %218 = sbr.rel (%p216) target = $region24
        $region23: #{tpu_custom_call.1} parent=11 // pred_region
          _
        $region24: #{tpu_custom_call.1} parent=11 // pred_fallthru
          _
        // Predicated region
        $region25: #{tpu_custom_call.1} parent=11 // pred_check
          %p219 = pneg %p127
        $region26: #{tpu_custom_call.1} parent=11 // pred_check_branch
          %221 = sbr.rel (%p219) target = $region28
        $region27: #{tpu_custom_call.1} parent=11 // pred_region
          _
        $region28: #{tpu_custom_call.1} parent=11 // pred_fallthru
          _
        // Predicated region
        $region29: #{tpu_custom_call.1} parent=11 // pred_check
          %p222 = pneg %p148
        $region30: #{tpu_custom_call.1} parent=11 // pred_check_branch
          %224 = sbr.rel (%p222) target = $region32
        $region31: #{tpu_custom_call.1} parent=11 // pred_region
          _
        $region32: #{tpu_custom_call.1} parent=11 // pred_fallthru
          _
        // Predicated region
        $region33: #{tpu_custom_call.1} parent=11 // pred_check
          %p225 = pneg %p169
        $region34: #{tpu_custom_call.1} parent=11 // pred_check_branch
          %227 = sbr.rel (%p225) target = $region36
        $region35: #{tpu_custom_call.1} parent=11 // pred_region
          _
        $region36: #{tpu_custom_call.1} parent=11 // pred_fallthru
          _
      $region12: #{tpu_custom_call.1} parent=5 // pred_fallthru
        _
      %p228 = scmp.lt.s32.totalorder %s17, 4
      // Predicated region
      $region37: #{tpu_custom_call.1} parent=5 // pred_check
        %p229 = pneg %p228
      $region38: #{tpu_custom_call.1} parent=5 // pred_check_branch
        %231 = sbr.rel (%p229) target = $region40
      $region39: #{tpu_custom_call.1} parent=5 // pred_region
        // Predicated region
        $region41: #{tpu_custom_call.1} parent=39 // pred_check
          %p232 = pneg %p37
        $region42: #{tpu_custom_call.1} parent=39 // pred_check_branch
          %234 = sbr.rel (%p232) target = $region44
        $region43: #{tpu_custom_call.1} parent=39 // pred_region
          %s235 = smul.u32 2, %s17
          %p236 = scmp.lt.s32.totalorder %s235, 7
          %s237 = scalar_select %p236, %s235, 7
          %s238 = scalar_lea.vmem %s0, %s237
          %s239 = smul.u32 2, %s17
        $region44: #{tpu_custom_call.1} parent=39 // pred_fallthru
          _
      $region40: #{tpu_custom_call.1} parent=5 // pred_fallthru
        _
      %p240 = scmp.le.s32.totalorder 1, %s17
      %p241 = scmp.lt.s32.totalorder %s17, 5
      %p242 = pnand %p240, %p241
      %p243 = pneg %p242
      // Predicated region
      $region45: #{tpu_custom_call.1} parent=5 // pred_check
        _
      $region46: #{tpu_custom_call.1} parent=5 // pred_check_branch
        %245 = sbr.rel (%p242) target = $region48
      $region47: #{tpu_custom_call.1} parent=5 // pred_region
        %s246 = ssub.s32 %s17, 1
        %s247 = smul.u32 2, %s22
        %p248 = scmp.lt.s32.totalorder %s247, 7
        %s249 = scalar_select %p248, %s247, 7
        %s250 = scalar_lea.vmem %s0, %s249
        %p251 = pneg %p43
        %p252 = pneg %p40
        %p253 = pneg %p64
        %p254 = pneg %p61
        %p255 = pneg %p85
        %p256 = pneg %p82
        %p257 = pneg %p106
        %p258 = pneg %p103
        %p259 = pneg %p127
        %p260 = pneg %p124
        %p261 = pneg %p148
        %p262 = pneg %p145
        %p263 = pneg %p169
        %p264 = pneg %p166
        %p265 = pneg %p195
        %p266 = pneg %p192
        %s267 = sand.u32 %s182, 1
        %s268 = scalar_lea.sflag [#allocation4], %s267
        %s269 = sand.u32 %s182, 1
        %s270 = smul.addr %s269, 2
        %s271 = scalar_lea.vmem [#allocation3], %s270
        %s272 = smul.u32 2, %s22
        %p273 = scmp.lt.s32.totalorder %s272, 7
        %s274 = scalar_select %p273, %s272, 7
        %s275 = scalar_lea.vmem %s0, %s274
        %s276 = smul.u32 2, %s22
        %s277 = smul.u32 2, %s22
        %v278 = vld [vmem:[%s275] sm:$0x3]
        %v279 = vld [vmem:[%s1] sm:$0xff]
        %v280 = vld [vmem:[%s1 + $0x8] sm:$0xff]
        %v281 = vld [vmem:[%s1 + $0x10] sm:$0xff]
        %v282 = vld [vmem:[%s1 + $0x18] sm:$0xff]
        %v283 = vld [vmem:[%s1 + $0x20] sm:$0xff]
        %v284 = vld [vmem:[%s1 + $0x28] sm:$0xff]
        %v285 = vld [vmem:[%s1 + $0x30] sm:$0xff]
        %v286 = vld [vmem:[%s1 + $0x38] sm:$0xff]
        %v287 = vld [vmem:[%s1 + $0x40] sm:$0xff]
        %v288 = vld [vmem:[%s1 + $0x48] sm:$0xff]
        %v289 = vld [vmem:[%s1 + $0x50] sm:$0xff]
        %v290 = vld [vmem:[%s1 + $0x58] sm:$0xff]
        %v291 = vld [vmem:[%s1 + $0x60] sm:$0xff]
        %v292 = vld [vmem:[%s1 + $0x68] sm:$0xff]
        %v293 = vld [vmem:[%s1 + $0x70] sm:$0xff]
        %v294 = vld [vmem:[%s1 + $0x78] sm:$0xff]
        %v295 = vld [vmem:[%s1 + $0x80] sm:$0xff]
        %v296 = vld [vmem:[%s1 + $0x88] sm:$0xff]
        %v297 = vld [vmem:[%s1 + $0x90] sm:$0xff]
        %v298 = vld [vmem:[%s1 + $0x98] sm:$0xff]
        %v299 = vld [vmem:[%s1 + $0xa0] sm:$0xff]
        %v300 = vld [vmem:[%s1 + $0xa8] sm:$0xff]
        %v301 = vld [vmem:[%s1 + $0xb0] sm:$0xff]
        %v302 = vld [vmem:[%s1 + $0xb8] sm:$0xff]
        %v303 = vld [vmem:[%s1 + $0xc0] sm:$0xff]
        %v304 = vld [vmem:[%s1 + $0xc8] sm:$0xff]
        %v305 = vld [vmem:[%s1 + $0xd0] sm:$0xff]
        %v306 = vld [vmem:[%s1 + $0xd8] sm:$0xff]
        %v307 = vld [vmem:[%s1 + $0xe0] sm:$0xff]
        %v308 = vld [vmem:[%s1 + $0xe8] sm:$0xff]
        %v309 = vld [vmem:[%s1 + $0xf0] sm:$0xff]
        %v310 = vld [vmem:[%s1 + $0xf8] sm:$0xff]
        %312 = vset.pattern.permute.xlu0 0
        %313 = vperm.xlu0 %312, %v279
        %v314 = vpop.permute.xlu0 %313
        %317 = vset.pattern.permute.xlu0 0
        %318 = vperm.xlu0 %317, %v280
        %v319 = vpop.permute.xlu0 %318
        %322 = vset.pattern.permute.xlu0 0
        %323 = vperm.xlu0 %322, %v281
        %v324 = vpop.permute.xlu0 %323
        %327 = vset.pattern.permute.xlu0 0
        %328 = vperm.xlu0 %327, %v282
        %v329 = vpop.permute.xlu0 %328
        %332 = vset.pattern.permute.xlu0 0
        %333 = vperm.xlu0 %332, %v283
        %v334 = vpop.permute.xlu0 %333
        %337 = vset.pattern.permute.xlu0 0
        %338 = vperm.xlu0 %337, %v284
        %v339 = vpop.permute.xlu0 %338
        %342 = vset.pattern.permute.xlu0 0
        %343 = vperm.xlu0 %342, %v285
        %v344 = vpop.permute.xlu0 %343
        %347 = vset.pattern.permute.xlu0 0
        %348 = vperm.xlu0 %347, %v286
        %v349 = vpop.permute.xlu0 %348
        %352 = vset.pattern.permute.xlu0 0
        %353 = vperm.xlu0 %352, %v287
        %v354 = vpop.permute.xlu0 %353
        %357 = vset.pattern.permute.xlu0 0
        %358 = vperm.xlu0 %357, %v288
        %v359 = vpop.permute.xlu0 %358
        %362 = vset.pattern.permute.xlu0 0
        %363 = vperm.xlu0 %362, %v289
        %v364 = vpop.permute.xlu0 %363
        %367 = vset.pattern.permute.xlu0 0
        %368 = vperm.xlu0 %367, %v290
        %v369 = vpop.permute.xlu0 %368
        %372 = vset.pattern.permute.xlu0 0
        %373 = vperm.xlu0 %372, %v291
        %v374 = vpop.permute.xlu0 %373
        %377 = vset.pattern.permute.xlu0 0
        %378 = vperm.xlu0 %377, %v292
        %v379 = vpop.permute.xlu0 %378
        %382 = vset.pattern.permute.xlu0 0
        %383 = vperm.xlu0 %382, %v293
        %v384 = vpop.permute.xlu0 %383
        %387 = vset.pattern.permute.xlu0 0
        %388 = vperm.xlu0 %387, %v294
        %v389 = vpop.permute.xlu0 %388
        %392 = vset.pattern.permute.xlu0 0
        %393 = vperm.xlu0 %392, %v295
        %v394 = vpop.permute.xlu0 %393
        %397 = vset.pattern.permute.xlu0 0
        %398 = vperm.xlu0 %397, %v296
        %v399 = vpop.permute.xlu0 %398
        %402 = vset.pattern.permute.xlu0 0
        %403 = vperm.xlu0 %402, %v297
        %v404 = vpop.permute.xlu0 %403
        %407 = vset.pattern.permute.xlu0 0
        %408 = vperm.xlu0 %407, %v298
        %v409 = vpop.permute.xlu0 %408
        %412 = vset.pattern.permute.xlu0 0
        %413 = vperm.xlu0 %412, %v299
        %v414 = vpop.permute.xlu0 %413
        %417 = vset.pattern.permute.xlu0 0
        %418 = vperm.xlu0 %417, %v300
        %v419 = vpop.permute.xlu0 %418
        %422 = vset.pattern.permute.xlu0 0
        %423 = vperm.xlu0 %422, %v301
        %v424 = vpop.permute.xlu0 %423
        %427 = vset.pattern.permute.xlu0 0
        %428 = vperm.xlu0 %427, %v302
        %v429 = vpop.permute.xlu0 %428
        %432 = vset.pattern.permute.xlu0 0
        %433 = vperm.xlu0 %432, %v303
        %v434 = vpop.permute.xlu0 %433
        %437 = vset.pattern.permute.xlu0 0
        %438 = vperm.xlu0 %437, %v304
        %v439 = vpop.permute.xlu0 %438
        %442 = vset.pattern.permute.xlu0 0
        %443 = vperm.xlu0 %442, %v305
        %v444 = vpop.permute.xlu0 %443
        %447 = vset.pattern.permute.xlu0 0
        %448 = vperm.xlu0 %447, %v306
        %v449 = vpop.permute.xlu0 %448
        %452 = vset.pattern.permute.xlu0 0
        %453 = vperm.xlu0 %452, %v307
        %v454 = vpop.permute.xlu0 %453
        %457 = vset.pattern.permute.xlu0 0
        %458 = vperm.xlu0 %457, %v308
        %v459 = vpop.permute.xlu0 %458
        %462 = vset.pattern.permute.xlu0 0
        %463 = vperm.xlu0 %462, %v309
        %v464 = vpop.permute.xlu0 %463
        %467 = vset.pattern.permute.xlu0 0
        %468 = vperm.xlu0 %467, %v310
        %v469 = vpop.permute.xlu0 %468
        %v472 = vlaneseq
        %v473 = vshrl.u32 %v472, 7
        %v474 = vsub.s32 0, %v473
        %v475 = vrot.slane %v278, %v474
        %v476 = vlaneseq
        %v477 = vshrl.u32 %v476, 7
        %v478 = vsub.s32 1, %v477
        %v479 = vrot.slane %v278, %v478
        %v482 = vmul.f32 %v314, %v475
        %v483 = vmul.f32 %v314, %v479
        %v484 = vmul.f32 %v319, %v475
        %v485 = vmul.f32 %v319, %v479
        %v486 = vmul.f32 %v324, %v475
        %v487 = vmul.f32 %v324, %v479
        %v488 = vmul.f32 %v329, %v475
        %v489 = vmul.f32 %v329, %v479
        %v490 = vmul.f32 %v334, %v475
        %v491 = vmul.f32 %v334, %v479
        %v492 = vmul.f32 %v339, %v475
        %v493 = vmul.f32 %v339, %v479
        %v494 = vmul.f32 %v344, %v475
        %v495 = vmul.f32 %v344, %v479
        %v496 = vmul.f32 %v349, %v475
        %v497 = vmul.f32 %v349, %v479
        %v498 = vmul.f32 %v354, %v475
        %v499 = vmul.f32 %v354, %v479
        %v500 = vmul.f32 %v359, %v475
        %v501 = vmul.f32 %v359, %v479
        %v502 = vmul.f32 %v364, %v475
        %v503 = vmul.f32 %v364, %v479
        %v504 = vmul.f32 %v369, %v475
        %v505 = vmul.f32 %v369, %v479
        %v506 = vmul.f32 %v374, %v475
        %v507 = vmul.f32 %v374, %v479
        %v508 = vmul.f32 %v379, %v475
        %v509 = vmul.f32 %v379, %v479
        %v510 = vmul.f32 %v384, %v475
        %v511 = vmul.f32 %v384, %v479
        %v512 = vmul.f32 %v389, %v475
        %v513 = vmul.f32 %v389, %v479
        %v514 = vmul.f32 %v394, %v475
        %v515 = vmul.f32 %v394, %v479
        %v516 = vmul.f32 %v399, %v475
        %v517 = vmul.f32 %v399, %v479
        %v518 = vmul.f32 %v404, %v475
        %v519 = vmul.f32 %v404, %v479
        %v520 = vmul.f32 %v409, %v475
        %v521 = vmul.f32 %v409, %v479
        %v522 = vmul.f32 %v414, %v475
        %v523 = vmul.f32 %v414, %v479
        %v524 = vmul.f32 %v419, %v475
        %v525 = vmul.f32 %v419, %v479
        %v526 = vmul.f32 %v424, %v475
        %v527 = vmul.f32 %v424, %v479
        %v528 = vmul.f32 %v429, %v475
        %v529 = vmul.f32 %v429, %v479
        %v530 = vmul.f32 %v434, %v475
        %v531 = vmul.f32 %v434, %v479
        %v532 = vmul.f32 %v439, %v475
        %v533 = vmul.f32 %v439, %v479
        %v534 = vmul.f32 %v444, %v475
        %v535 = vmul.f32 %v444, %v479
        %v536 = vmul.f32 %v449, %v475
        %v537 = vmul.f32 %v449, %v479
        %v538 = vmul.f32 %v454, %v475
        %v539 = vmul.f32 %v454, %v479
        %v540 = vmul.f32 %v459, %v475
        %v541 = vmul.f32 %v459, %v479
        %v542 = vmul.f32 %v464, %v475
        %v543 = vmul.f32 %v464, %v479
        %v544 = vmul.f32 %v469, %v475
        %v545 = vmul.f32 %v469, %v479
        %v546 = vld [vmem:[%s2] sm:$0xff]
        %v547 = vld [vmem:[%s2 + $0x8] sm:$0xff]
        %v548 = vld [vmem:[%s2 + $0x10] sm:$0xff]
        %v549 = vld [vmem:[%s2 + $0x18] sm:$0xff]
        %v550 = vld [vmem:[%s2 + $0x20] sm:$0xff]
        %v551 = vld [vmem:[%s2 + $0x28] sm:$0xff]
        %v552 = vld [vmem:[%s2 + $0x30] sm:$0xff]
        %v553 = vld [vmem:[%s2 + $0x38] sm:$0xff]
        %v554 = vld [vmem:[%s2 + $0x40] sm:$0xff]
        %v555 = vld [vmem:[%s2 + $0x48] sm:$0xff]
        %v556 = vld [vmem:[%s2 + $0x50] sm:$0xff]
        %v557 = vld [vmem:[%s2 + $0x58] sm:$0xff]
        %v558 = vld [vmem:[%s2 + $0x60] sm:$0xff]
        %v559 = vld [vmem:[%s2 + $0x68] sm:$0xff]
        %v560 = vld [vmem:[%s2 + $0x70] sm:$0xff]
        %v561 = vld [vmem:[%s2 + $0x78] sm:$0xff]
        %v562 = vld [vmem:[%s2 + $0x80] sm:$0xff]
        %v563 = vld [vmem:[%s2 + $0x88] sm:$0xff]
        %v564 = vld [vmem:[%s2 + $0x90] sm:$0xff]
        %v565 = vld [vmem:[%s2 + $0x98] sm:$0xff]
        %v566 = vld [vmem:[%s2 + $0xa0] sm:$0xff]
        %v567 = vld [vmem:[%s2 + $0xa8] sm:$0xff]
        %v568 = vld [vmem:[%s2 + $0xb0] sm:$0xff]
        %v569 = vld [vmem:[%s2 + $0xb8] sm:$0xff]
        %v570 = vld [vmem:[%s2 + $0xc0] sm:$0xff]
        %v571 = vld [vmem:[%s2 + $0xc8] sm:$0xff]
        %v572 = vld [vmem:[%s2 + $0xd0] sm:$0xff]
        %v573 = vld [vmem:[%s2 + $0xd8] sm:$0xff]
        %v574 = vld [vmem:[%s2 + $0xe0] sm:$0xff]
        %v575 = vld [vmem:[%s2 + $0xe8] sm:$0xff]
        %v576 = vld [vmem:[%s2 + $0xf0] sm:$0xff]
        %v577 = vld [vmem:[%s2 + $0xf8] sm:$0xff]
        %579 = vset.pattern.permute.xlu0 0
        %580 = vperm.xlu0 %579, %v546
        %v581 = vpop.permute.xlu0 %580
        %584 = vset.pattern.permute.xlu0 0
        %585 = vperm.xlu0 %584, %v547
        %v586 = vpop.permute.xlu0 %585
        %589 = vset.pattern.permute.xlu0 0
        %590 = vperm.xlu0 %589, %v548
        %v591 = vpop.permute.xlu0 %590
        %594 = vset.pattern.permute.xlu0 0
        %595 = vperm.xlu0 %594, %v549
        %v596 = vpop.permute.xlu0 %595
        %599 = vset.pattern.permute.xlu0 0
        %600 = vperm.xlu0 %599, %v550
        %v601 = vpop.permute.xlu0 %600
        %604 = vset.pattern.permute.xlu0 0
        %605 = vperm.xlu0 %604, %v551
        %v606 = vpop.permute.xlu0 %605
        %609 = vset.pattern.permute.xlu0 0
        %610 = vperm.xlu0 %609, %v552
        %v611 = vpop.permute.xlu0 %610
        %614 = vset.pattern.permute.xlu0 0
        %615 = vperm.xlu0 %614, %v553
        %v616 = vpop.permute.xlu0 %615
        %619 = vset.pattern.permute.xlu0 0
        %620 = vperm.xlu0 %619, %v554
        %v621 = vpop.permute.xlu0 %620
        %624 = vset.pattern.permute.xlu0 0
        %625 = vperm.xlu0 %624, %v555
        %v626 = vpop.permute.xlu0 %625
        %629 = vset.pattern.permute.xlu0 0
        %630 = vperm.xlu0 %629, %v556
        %v631 = vpop.permute.xlu0 %630
        %634 = vset.pattern.permute.xlu0 0
        %635 = vperm.xlu0 %634, %v557
        %v636 = vpop.permute.xlu0 %635
        %639 = vset.pattern.permute.xlu0 0
        %640 = vperm.xlu0 %639, %v558
        %v641 = vpop.permute.xlu0 %640
        %644 = vset.pattern.permute.xlu0 0
        %645 = vperm.xlu0 %644, %v559
        %v646 = vpop.permute.xlu0 %645
        %649 = vset.pattern.permute.xlu0 0
        %650 = vperm.xlu0 %649, %v560
        %v651 = vpop.permute.xlu0 %650
        %654 = vset.pattern.permute.xlu0 0
        %655 = vperm.xlu0 %654, %v561
        %v656 = vpop.permute.xlu0 %655
        %659 = vset.pattern.permute.xlu0 0
        %660 = vperm.xlu0 %659, %v562
        %v661 = vpop.permute.xlu0 %660
        %664 = vset.pattern.permute.xlu0 0
        %665 = vperm.xlu0 %664, %v563
        %v666 = vpop.permute.xlu0 %665
        %669 = vset.pattern.permute.xlu0 0
        %670 = vperm.xlu0 %669, %v564
        %v671 = vpop.permute.xlu0 %670
        %674 = vset.pattern.permute.xlu0 0
        %675 = vperm.xlu0 %674, %v565
        %v676 = vpop.permute.xlu0 %675
        %679 = vset.pattern.permute.xlu0 0
        %680 = vperm.xlu0 %679, %v566
        %v681 = vpop.permute.xlu0 %680
        %684 = vset.pattern.permute.xlu0 0
        %685 = vperm.xlu0 %684, %v567
        %v686 = vpop.permute.xlu0 %685
        %689 = vset.pattern.permute.xlu0 0
        %690 = vperm.xlu0 %689, %v568
        %v691 = vpop.permute.xlu0 %690
        %694 = vset.pattern.permute.xlu0 0
        %695 = vperm.xlu0 %694, %v569
        %v696 = vpop.permute.xlu0 %695
        %699 = vset.pattern.permute.xlu0 0
        %700 = vperm.xlu0 %699, %v570
        %v701 = vpop.permute.xlu0 %700
        %704 = vset.pattern.permute.xlu0 0
        %705 = vperm.xlu0 %704, %v571
        %v706 = vpop.permute.xlu0 %705
        %709 = vset.pattern.permute.xlu0 0
        %710 = vperm.xlu0 %709, %v572
        %v711 = vpop.permute.xlu0 %710
        %714 = vset.pattern.permute.xlu0 0
        %715 = vperm.xlu0 %714, %v573
        %v716 = vpop.permute.xlu0 %715
        %719 = vset.pattern.permute.xlu0 0
        %720 = vperm.xlu0 %719, %v574
        %v721 = vpop.permute.xlu0 %720
        %724 = vset.pattern.permute.xlu0 0
        %725 = vperm.xlu0 %724, %v575
        %v726 = vpop.permute.xlu0 %725
        %729 = vset.pattern.permute.xlu0 0
        %730 = vperm.xlu0 %729, %v576
        %v731 = vpop.permute.xlu0 %730
        %734 = vset.pattern.permute.xlu0 0
        %735 = vperm.xlu0 %734, %v577
        %v736 = vpop.permute.xlu0 %735
        %v738 = vadd.f32 %v482, %v581
        %v739 = vadd.f32 %v483, %v581
        %v740 = vadd.f32 %v484, %v586
        %v741 = vadd.f32 %v485, %v586
        %v742 = vadd.f32 %v486, %v591
        %v743 = vadd.f32 %v487, %v591
        %v744 = vadd.f32 %v488, %v596
        %v745 = vadd.f32 %v489, %v596
        %v746 = vadd.f32 %v490, %v601
        %v747 = vadd.f32 %v491, %v601
        %v748 = vadd.f32 %v492, %v606
        %v749 = vadd.f32 %v493, %v606
        %v750 = vadd.f32 %v494, %v611
        %v751 = vadd.f32 %v495, %v611
        %v752 = vadd.f32 %v496, %v616
        %v753 = vadd.f32 %v497, %v616
        %v754 = vadd.f32 %v498, %v621
        %v755 = vadd.f32 %v499, %v621
        %v756 = vadd.f32 %v500, %v626
        %v757 = vadd.f32 %v501, %v626
        %v758 = vadd.f32 %v502, %v631
        %v759 = vadd.f32 %v503, %v631
        %v760 = vadd.f32 %v504, %v636
        %v761 = vadd.f32 %v505, %v636
        %v762 = vadd.f32 %v506, %v641
        %v763 = vadd.f32 %v507, %v641
        %v764 = vadd.f32 %v508, %v646
        %v765 = vadd.f32 %v509, %v646
        %v766 = vadd.f32 %v510, %v651
        %v767 = vadd.f32 %v511, %v651
        %v768 = vadd.f32 %v512, %v656
        %v769 = vadd.f32 %v513, %v656
        %v770 = vadd.f32 %v514, %v661
        %v771 = vadd.f32 %v515, %v661
        %v772 = vadd.f32 %v516, %v666
        %v773 = vadd.f32 %v517, %v666
        %v774 = vadd.f32 %v518, %v671
        %v775 = vadd.f32 %v519, %v671
        %v776 = vadd.f32 %v520, %v676
        %v777 = vadd.f32 %v521, %v676
        %v778 = vadd.f32 %v522, %v681
        %v779 = vadd.f32 %v523, %v681
        %v780 = vadd.f32 %v524, %v686
        %v781 = vadd.f32 %v525, %v686
        %v782 = vadd.f32 %v526, %v691
        %v783 = vadd.f32 %v527, %v691
        %v784 = vadd.f32 %v528, %v696
        %v785 = vadd.f32 %v529, %v696
        %v786 = vadd.f32 %v530, %v701
        %v787 = vadd.f32 %v531, %v701
        %v788 = vadd.f32 %v532, %v706
        %v789 = vadd.f32 %v533, %v706
        %v790 = vadd.f32 %v534, %v711
        %v791 = vadd.f32 %v535, %v711
        %v792 = vadd.f32 %v536, %v716
        %v793 = vadd.f32 %v537, %v716
        %v794 = vadd.f32 %v538, %v721
        %v795 = vadd.f32 %v539, %v721
        %v796 = vadd.f32 %v540, %v726
        %v797 = vadd.f32 %v541, %v726
        %v798 = vadd.f32 %v542, %v731
        %v799 = vadd.f32 %v543, %v731
        %v800 = vadd.f32 %v544, %v736
        %v801 = vadd.f32 %v545, %v736
        %v802 = vmax.f32 %v738, 0.0
        %v803 = vmax.f32 %v739, 0.0
        %v804 = vmax.f32 %v740, 0.0
        %v805 = vmax.f32 %v741, 0.0
        %v806 = vmax.f32 %v742, 0.0
        %v807 = vmax.f32 %v743, 0.0
        %v808 = vmax.f32 %v744, 0.0
        %v809 = vmax.f32 %v745, 0.0
        %v810 = vmax.f32 %v746, 0.0
        %v811 = vmax.f32 %v747, 0.0
        %v812 = vmax.f32 %v748, 0.0
        %v813 = vmax.f32 %v749, 0.0
        %v814 = vmax.f32 %v750, 0.0
        %v815 = vmax.f32 %v751, 0.0
        %v816 = vmax.f32 %v752, 0.0
        %v817 = vmax.f32 %v753, 0.0
        %v818 = vmax.f32 %v754, 0.0
        %v819 = vmax.f32 %v755, 0.0
        %v820 = vmax.f32 %v756, 0.0
        %v821 = vmax.f32 %v757, 0.0
        %v822 = vmax.f32 %v758, 0.0
        %v823 = vmax.f32 %v759, 0.0
        %v824 = vmax.f32 %v760, 0.0
        %v825 = vmax.f32 %v761, 0.0
        %v826 = vmax.f32 %v762, 0.0
        %v827 = vmax.f32 %v763, 0.0
        %v828 = vmax.f32 %v764, 0.0
        %v829 = vmax.f32 %v765, 0.0
        %v830 = vmax.f32 %v766, 0.0
        %v831 = vmax.f32 %v767, 0.0
        %v832 = vmax.f32 %v768, 0.0
        %v833 = vmax.f32 %v769, 0.0
        %v834 = vmax.f32 %v770, 0.0
        %v835 = vmax.f32 %v771, 0.0
        %v836 = vmax.f32 %v772, 0.0
        %v837 = vmax.f32 %v773, 0.0
        %v838 = vmax.f32 %v774, 0.0
        %v839 = vmax.f32 %v775, 0.0
        %v840 = vmax.f32 %v776, 0.0
        %v841 = vmax.f32 %v777, 0.0
        %v842 = vmax.f32 %v778, 0.0
        %v843 = vmax.f32 %v779, 0.0
        %v844 = vmax.f32 %v780, 0.0
        %v845 = vmax.f32 %v781, 0.0
        %v846 = vmax.f32 %v782, 0.0
        %v847 = vmax.f32 %v783, 0.0
        %v848 = vmax.f32 %v784, 0.0
        %v849 = vmax.f32 %v785, 0.0
        %v850 = vmax.f32 %v786, 0.0
        %v851 = vmax.f32 %v787, 0.0
        %v852 = vmax.f32 %v788, 0.0
        %v853 = vmax.f32 %v789, 0.0
        %v854 = vmax.f32 %v790, 0.0
        %v855 = vmax.f32 %v791, 0.0
        %v856 = vmax.f32 %v792, 0.0
        %v857 = vmax.f32 %v793, 0.0
        %v858 = vmax.f32 %v794, 0.0
        %v859 = vmax.f32 %v795, 0.0
        %v860 = vmax.f32 %v796, 0.0
        %v861 = vmax.f32 %v797, 0.0
        %v862 = vmax.f32 %v798, 0.0
        %v863 = vmax.f32 %v799, 0.0
        %v864 = vmax.f32 %v800, 0.0
        %v865 = vmax.f32 %v801, 0.0
        %v866 = vld [vmem:[%s3] sm:$0xff]
        %v867 = vld [vmem:[%s3 + $0x8] sm:$0xff]
        %v868 = vld [vmem:[%s3 + $0x10] sm:$0xff]
        %v869 = vld [vmem:[%s3 + $0x18] sm:$0xff]
        %v870 = vld [vmem:[%s3 + $0x20] sm:$0xff]
        %v871 = vld [vmem:[%s3 + $0x28] sm:$0xff]
        %v872 = vld [vmem:[%s3 + $0x30] sm:$0xff]
        %v873 = vld [vmem:[%s3 + $0x38] sm:$0xff]
        %v874 = vld [vmem:[%s3 + $0x40] sm:$0xff]
        %v875 = vld [vmem:[%s3 + $0x48] sm:$0xff]
        %v876 = vld [vmem:[%s3 + $0x50] sm:$0xff]
        %v877 = vld [vmem:[%s3 + $0x58] sm:$0xff]
        %v878 = vld [vmem:[%s3 + $0x60] sm:$0xff]
        %v879 = vld [vmem:[%s3 + $0x68] sm:$0xff]
        %v880 = vld [vmem:[%s3 + $0x70] sm:$0xff]
        %v881 = vld [vmem:[%s3 + $0x78] sm:$0xff]
        %v882 = vld [vmem:[%s3 + $0x80] sm:$0xff]
        %v883 = vld [vmem:[%s3 + $0x88] sm:$0xff]
        %v884 = vld [vmem:[%s3 + $0x90] sm:$0xff]
        %v885 = vld [vmem:[%s3 + $0x98] sm:$0xff]
        %v886 = vld [vmem:[%s3 + $0xa0] sm:$0xff]
        %v887 = vld [vmem:[%s3 + $0xa8] sm:$0xff]
        %v888 = vld [vmem:[%s3 + $0xb0] sm:$0xff]
        %v889 = vld [vmem:[%s3 + $0xb8] sm:$0xff]
        %v890 = vld [vmem:[%s3 + $0xc0] sm:$0xff]
        %v891 = vld [vmem:[%s3 + $0xc8] sm:$0xff]
        %v892 = vld [vmem:[%s3 + $0xd0] sm:$0xff]
        %v893 = vld [vmem:[%s3 + $0xd8] sm:$0xff]
        %v894 = vld [vmem:[%s3 + $0xe0] sm:$0xff]
        %v895 = vld [vmem:[%s3 + $0xe8] sm:$0xff]
        %v896 = vld [vmem:[%s3 + $0xf0] sm:$0xff]
        %v897 = vld [vmem:[%s3 + $0xf8] sm:$0xff]
        %v898 = vpack.c.bf16 %v804, %v802
        %v899 = vpack.c.bf16 %v805, %v803
        %v900 = vpack.c.bf16 %v808, %v806
        %v901 = vpack.c.bf16 %v809, %v807
        %v902 = vpack.c.bf16 %v812, %v810
        %v903 = vpack.c.bf16 %v813, %v811
        %v904 = vpack.c.bf16 %v816, %v814
        %v905 = vpack.c.bf16 %v817, %v815
        %v906 = vpack.c.bf16 %v820, %v818
        %v907 = vpack.c.bf16 %v821, %v819
        %v908 = vpack.c.bf16 %v824, %v822
        %v909 = vpack.c.bf16 %v825, %v823
        %v910 = vpack.c.bf16 %v828, %v826
        %v911 = vpack.c.bf16 %v829, %v827
        %v912 = vpack.c.bf16 %v832, %v830
        %v913 = vpack.c.bf16 %v833, %v831
        %v914 = vpack.c.bf16 %v836, %v834
        %v915 = vpack.c.bf16 %v837, %v835
        %v916 = vpack.c.bf16 %v840, %v838
        %v917 = vpack.c.bf16 %v841, %v839
        %v918 = vpack.c.bf16 %v844, %v842
        %v919 = vpack.c.bf16 %v845, %v843
        %v920 = vpack.c.bf16 %v848, %v846
        %v921 = vpack.c.bf16 %v849, %v847
        %v922 = vpack.c.bf16 %v852, %v850
        %v923 = vpack.c.bf16 %v853, %v851
        %v924 = vpack.c.bf16 %v856, %v854
        %v925 = vpack.c.bf16 %v857, %v855
        %v926 = vpack.c.bf16 %v860, %v858
        %v927 = vpack.c.bf16 %v861, %v859
        %v928 = vpack.c.bf16 %v864, %v862
        %v929 = vpack.c.bf16 %v865, %v863
        %v930 = vld [vmem:[%s4] sm:$0xff]
        %v931 = vld [vmem:[%s4 + $0x8] sm:$0xff]
        %v932 = vld [vmem:[%s4 + $0x10] sm:$0xff]
        %v933 = vld [vmem:[%s4 + $0x18] sm:$0xff]
        %v934 = vld [vmem:[%s4 + $0x20] sm:$0xff]
        %v935 = vld [vmem:[%s4 + $0x28] sm:$0xff]
        %v936 = vld [vmem:[%s4 + $0x30] sm:$0xff]
        %v937 = vld [vmem:[%s4 + $0x38] sm:$0xff]
        %v938 = vld [vmem:[%s4 + $0x40] sm:$0xff]
        %v939 = vld [vmem:[%s4 + $0x48] sm:$0xff]
        %v940 = vld [vmem:[%s4 + $0x50] sm:$0xff]
        %v941 = vld [vmem:[%s4 + $0x58] sm:$0xff]
        %v942 = vld [vmem:[%s4 + $0x60] sm:$0xff]
        %v943 = vld [vmem:[%s4 + $0x68] sm:$0xff]
        %v944 = vld [vmem:[%s4 + $0x70] sm:$0xff]
        %v945 = vld [vmem:[%s4 + $0x78] sm:$0xff]
        %v946 = vld [vmem:[%s4 + $0x80] sm:$0xff]
        %v947 = vld [vmem:[%s4 + $0x88] sm:$0xff]
        %v948 = vld [vmem:[%s4 + $0x90] sm:$0xff]
        %v949 = vld [vmem:[%s4 + $0x98] sm:$0xff]
        %v950 = vld [vmem:[%s4 + $0xa0] sm:$0xff]
        %v951 = vld [vmem:[%s4 + $0xa8] sm:$0xff]
        %v952 = vld [vmem:[%s4 + $0xb0] sm:$0xff]
        %v953 = vld [vmem:[%s4 + $0xb8] sm:$0xff]
        %v954 = vld [vmem:[%s4 + $0xc0] sm:$0xff]
        %v955 = vld [vmem:[%s4 + $0xc8] sm:$0xff]
        %v956 = vld [vmem:[%s4 + $0xd0] sm:$0xff]
        %v957 = vld [vmem:[%s4 + $0xd8] sm:$0xff]
        %v958 = vld [vmem:[%s4 + $0xe0] sm:$0xff]
        %v959 = vld [vmem:[%s4 + $0xe8] sm:$0xff]
        %v960 = vld [vmem:[%s4 + $0xf0] sm:$0xff]
        %v961 = vld [vmem:[%s4 + $0xf8] sm:$0xff]
        %963 = vset.pattern.permute.xlu0 0
        %964 = vperm.xlu0 %963, %v930
        %v965 = vpop.permute.xlu0 %964
        %968 = vset.pattern.permute.xlu0 0
        %969 = vperm.xlu0 %968, %v931
        %v970 = vpop.permute.xlu0 %969
        %973 = vset.pattern.permute.xlu0 0
        %974 = vperm.xlu0 %973, %v932
        %v975 = vpop.permute.xlu0 %974
        %978 = vset.pattern.permute.xlu0 0
        %979 = vperm.xlu0 %978, %v933
        %v980 = vpop.permute.xlu0 %979
        %983 = vset.pattern.permute.xlu0 0
        %984 = vperm.xlu0 %983, %v934
        %v985 = vpop.permute.xlu0 %984
        %988 = vset.pattern.permute.xlu0 0
        %989 = vperm.xlu0 %988, %v935
        %v990 = vpop.permute.xlu0 %989
        %993 = vset.pattern.permute.xlu0 0
        %994 = vperm.xlu0 %993, %v936
        %v995 = vpop.permute.xlu0 %994
        %998 = vset.pattern.permute.xlu0 0
        %999 = vperm.xlu0 %998, %v937
        %v1000 = vpop.permute.xlu0 %999
        %1003 = vset.pattern.permute.xlu0 0
        %1004 = vperm.xlu0 %1003, %v938
        %v1005 = vpop.permute.xlu0 %1004
        %1008 = vset.pattern.permute.xlu0 0
        %1009 = vperm.xlu0 %1008, %v939
        %v1010 = vpop.permute.xlu0 %1009
        %1013 = vset.pattern.permute.xlu0 0
        %1014 = vperm.xlu0 %1013, %v940
        %v1015 = vpop.permute.xlu0 %1014
        %1018 = vset.pattern.permute.xlu0 0
        %1019 = vperm.xlu0 %1018, %v941
        %v1020 = vpop.permute.xlu0 %1019
        %1023 = vset.pattern.permute.xlu0 0
        %1024 = vperm.xlu0 %1023, %v942
        %v1025 = vpop.permute.xlu0 %1024
        %1028 = vset.pattern.permute.xlu0 0
        %1029 = vperm.xlu0 %1028, %v943
        %v1030 = vpop.permute.xlu0 %1029
        %1033 = vset.pattern.permute.xlu0 0
        %1034 = vperm.xlu0 %1033, %v944
        %v1035 = vpop.permute.xlu0 %1034
        %1038 = vset.pattern.permute.xlu0 0
        %1039 = vperm.xlu0 %1038, %v945
        %v1040 = vpop.permute.xlu0 %1039
        %1043 = vset.pattern.permute.xlu0 0
        %1044 = vperm.xlu0 %1043, %v946
        %v1045 = vpop.permute.xlu0 %1044
        %1048 = vset.pattern.permute.xlu0 0
        %1049 = vperm.xlu0 %1048, %v947
        %v1050 = vpop.permute.xlu0 %1049
        %1053 = vset.pattern.permute.xlu0 0
        %1054 = vperm.xlu0 %1053, %v948
        %v1055 = vpop.permute.xlu0 %1054
        %1058 = vset.pattern.permute.xlu0 0
        %1059 = vperm.xlu0 %1058, %v949
        %v1060 = vpop.permute.xlu0 %1059
        %1063 = vset.pattern.permute.xlu0 0
        %1064 = vperm.xlu0 %1063, %v950
        %v1065 = vpop.permute.xlu0 %1064
        %1068 = vset.pattern.permute.xlu0 0
        %1069 = vperm.xlu0 %1068, %v951
        %v1070 = vpop.permute.xlu0 %1069
        %1073 = vset.pattern.permute.xlu0 0
        %1074 = vperm.xlu0 %1073, %v952
        %v1075 = vpop.permute.xlu0 %1074
        %1078 = vset.pattern.permute.xlu0 0
        %1079 = vperm.xlu0 %1078, %v953
        %v1080 = vpop.permute.xlu0 %1079
        %1083 = vset.pattern.permute.xlu0 0
        %1084 = vperm.xlu0 %1083, %v954
        %v1085 = vpop.permute.xlu0 %1084
        %1088 = vset.pattern.permute.xlu0 0
        %1089 = vperm.xlu0 %1088, %v955
        %v1090 = vpop.permute.xlu0 %1089
        %1093 = vset.pattern.permute.xlu0 0
        %1094 = vperm.xlu0 %1093, %v956
        %v1095 = vpop.permute.xlu0 %1094
        %1098 = vset.pattern.permute.xlu0 0
        %1099 = vperm.xlu0 %1098, %v957
        %v1100 = vpop.permute.xlu0 %1099
        %1103 = vset.pattern.permute.xlu0 0
        %1104 = vperm.xlu0 %1103, %v958
        %v1105 = vpop.permute.xlu0 %1104
        %1108 = vset.pattern.permute.xlu0 0
        %1109 = vperm.xlu0 %1108, %v959
        %v1110 = vpop.permute.xlu0 %1109
        %1113 = vset.pattern.permute.xlu0 0
        %1114 = vperm.xlu0 %1113, %v960
        %v1115 = vpop.permute.xlu0 %1114
        %1118 = vset.pattern.permute.xlu0 0
        %1119 = vperm.xlu0 %1118, %v961
        %v1120 = vpop.permute.xlu0 %1119
        %v1154 = vunpack.c.l.b16 %v866
        %v1155 = vunpack.c.h.b16 %v866
        %v1156 = vunpack.c.l.b16 %v867
        %v1157 = vunpack.c.h.b16 %v867
        %v1158 = vunpack.c.l.b16 %v868
        %v1159 = vunpack.c.h.b16 %v868
        %v1160 = vunpack.c.l.b16 %v869
        %v1161 = vunpack.c.h.b16 %v869
        %v1162 = vunpack.c.l.b16 %v870
        %v1163 = vunpack.c.h.b16 %v870
        %v1164 = vunpack.c.l.b16 %v871
        %v1165 = vunpack.c.h.b16 %v871
        %v1166 = vunpack.c.l.b16 %v872
        %v1167 = vunpack.c.h.b16 %v872
        %v1168 = vunpack.c.l.b16 %v873
        %v1169 = vunpack.c.h.b16 %v873
        %v1170 = vunpack.c.l.b16 %v874
        %v1171 = vunpack.c.h.b16 %v874
        %v1172 = vunpack.c.l.b16 %v875
        %v1173 = vunpack.c.h.b16 %v875
        %v1174 = vunpack.c.l.b16 %v876
        %v1175 = vunpack.c.h.b16 %v876
        %v1176 = vunpack.c.l.b16 %v877
        %v1177 = vunpack.c.h.b16 %v877
        %v1178 = vunpack.c.l.b16 %v878
        %v1179 = vunpack.c.h.b16 %v878
        %v1180 = vunpack.c.l.b16 %v879
        %v1181 = vunpack.c.h.b16 %v879
        %v1182 = vunpack.c.l.b16 %v880
        %v1183 = vunpack.c.h.b16 %v880
        %v1184 = vunpack.c.l.b16 %v881
        %v1185 = vunpack.c.h.b16 %v881
        %v1186 = vunpack.c.l.b16 %v882
        %v1187 = vunpack.c.h.b16 %v882
        %v1188 = vunpack.c.l.b16 %v883
        %v1189 = vunpack.c.h.b16 %v883
        %v1190 = vunpack.c.l.b16 %v884
        %v1191 = vunpack.c.h.b16 %v884
        %v1192 = vunpack.c.l.b16 %v885
        %v1193 = vunpack.c.h.b16 %v885
        %v1194 = vunpack.c.l.b16 %v886
        %v1195 = vunpack.c.h.b16 %v886
        %v1196 = vunpack.c.l.b16 %v887
        %v1197 = vunpack.c.h.b16 %v887
        %v1198 = vunpack.c.l.b16 %v888
        %v1199 = vunpack.c.h.b16 %v888
        %v1200 = vunpack.c.l.b16 %v889
        %v1201 = vunpack.c.h.b16 %v889
        %v1202 = vunpack.c.l.b16 %v890
        %v1203 = vunpack.c.h.b16 %v890
        %v1204 = vunpack.c.l.b16 %v891
        %v1205 = vunpack.c.h.b16 %v891
        %v1206 = vunpack.c.l.b16 %v892
        %v1207 = vunpack.c.h.b16 %v892
        %v1208 = vunpack.c.l.b16 %v893
        %v1209 = vunpack.c.h.b16 %v893
        %v1210 = vunpack.c.l.b16 %v894
        %v1211 = vunpack.c.h.b16 %v894
        %v1212 = vunpack.c.l.b16 %v895
        %v1213 = vunpack.c.h.b16 %v895
        %v1214 = vunpack.c.l.b16 %v896
        %v1215 = vunpack.c.h.b16 %v896
        %v1216 = vunpack.c.l.b16 %v897
        %v1217 = vunpack.c.h.b16 %v897
        %v1218 = vpack.c.b16 %v1156, %v1154
        %v1219 = vpack.c.b16 %v1157, %v1155
        %v1220 = vpack.c.b16 %v1160, %v1158
        %v1221 = vpack.c.b16 %v1161, %v1159
        %v1222 = vpack.c.b16 %v1164, %v1162
        %v1223 = vpack.c.b16 %v1165, %v1163
        %v1224 = vpack.c.b16 %v1168, %v1166
        %v1225 = vpack.c.b16 %v1169, %v1167
        %v1226 = vpack.c.b16 %v1172, %v1170
        %v1227 = vpack.c.b16 %v1173, %v1171
        %v1228 = vpack.c.b16 %v1176, %v1174
        %v1229 = vpack.c.b16 %v1177, %v1175
        %v1230 = vpack.c.b16 %v1180, %v1178
        %v1231 = vpack.c.b16 %v1181, %v1179
        %v1232 = vpack.c.b16 %v1184, %v1182
        %v1233 = vpack.c.b16 %v1185, %v1183
        %v1234 = vpack.c.b16 %v1188, %v1186
        %v1235 = vpack.c.b16 %v1189, %v1187
        %v1236 = vpack.c.b16 %v1192, %v1190
        %v1237 = vpack.c.b16 %v1193, %v1191
        %v1238 = vpack.c.b16 %v1196, %v1194
        %v1239 = vpack.c.b16 %v1197, %v1195
        %v1240 = vpack.c.b16 %v1200, %v1198
        %v1241 = vpack.c.b16 %v1201, %v1199
        %v1242 = vpack.c.b16 %v1204, %v1202
        %v1243 = vpack.c.b16 %v1205, %v1203
        %v1244 = vpack.c.b16 %v1208, %v1206
        %v1245 = vpack.c.b16 %v1209, %v1207
        %v1246 = vpack.c.b16 %v1212, %v1210
        %v1247 = vpack.c.b16 %v1213, %v1211
        %v1248 = vpack.c.b16 %v1216, %v1214
        %v1249 = vpack.c.b16 %v1217, %v1215
        %1282 = vmatprep.subr.bf16.mxu0 %v899
        %1283 = vmatpush1.bf16.msra.mxu0 %v898
        %1284 = vmatprep.subr.bf16.mxu0 %v901
        %1285 = vmatpush1.bf16.msra.mxu0 %v900
        %1286 = vmatprep.subr.bf16.mxu0 %v903
        %1287 = vmatpush1.bf16.msra.mxu0 %v902
        %1288 = vmatprep.subr.bf16.mxu0 %v905
        %1289 = vmatpush1.bf16.msra.mxu0 %v904
        %1290 = vmatprep.subr.bf16.mxu0 %v907
        %1291 = vmatpush1.bf16.msra.mxu0 %v906
        %1292 = vmatprep.subr.bf16.mxu0 %v909
        %1293 = vmatpush1.bf16.msra.mxu0 %v908
        %1294 = vmatprep.subr.bf16.mxu0 %v911
        %1295 = vmatpush1.bf16.msra.mxu0 %v910
        %1296 = vmatprep.subr.bf16.mxu0 %v913
        %1297 = vmatpush1.bf16.msra.mxu0 %v912
        %1298 = vmatprep.subr.bf16.mxu0 %v915
        %1299 = vmatpush1.bf16.msra.mxu0 %v914
        %1300 = vmatprep.subr.bf16.mxu0 %v917
        %1301 = vmatpush1.bf16.msra.mxu0 %v916
        %1302 = vmatprep.subr.bf16.mxu0 %v919
        %1303 = vmatpush1.bf16.msra.mxu0 %v918
        %1304 = vmatprep.subr.bf16.mxu0 %v921
        %1305 = vmatpush1.bf16.msra.mxu0 %v920
        %1306 = vmatprep.subr.bf16.mxu0 %v923
        %1307 = vmatpush1.bf16.msra.mxu0 %v922
        %1308 = vmatprep.subr.bf16.mxu0 %v925
        %1309 = vmatpush1.bf16.msra.mxu0 %v924
        %1310 = vmatprep.subr.bf16.mxu0 %v927
        %1311 = vmatpush1.bf16.msra.mxu0 %v926
        %1312 = vmatprep.subr.bf16.mxu0 %v929
        %1313 = vmatpush1.bf16.msra.mxu0 %v928
        %1314 = vmatprep.mubr.bf16.mxu0 %v1219
        %1315 = vmatmul.mubr.bf16.gmra.mrb[0].mxu0 %v1218
        %v1316 = vpop.f32.mrb[0].mxu0
        %v1317 = vadd.f32 %v965, %v1316
        %v1318 = vpop.f32.mrb[0].mxu0
        %v1319 = vadd.f32 %v965, %v1318
        %v1320 = vpop.f32.mrb[0].mxu0
        %v1321 = vadd.f32 %v970, %v1320
        %v1322 = vpop.f32.mrb[0].mxu0
        %v1323 = vadd.f32 %v970, %v1322
        %1324 = vmatprep.mubr.bf16.mxu0 %v1221
        %1325 = vmatmul.mubr.bf16.gmra.mrb[0].mxu0 %v1220
        %v1326 = vpop.f32.mrb[0].mxu0
        %v1327 = vadd.f32 %v975, %v1326
        %v1328 = vpop.f32.mrb[0].mxu0
        %v1329 = vadd.f32 %v975, %v1328
        %v1330 = vpop.f32.mrb[0].mxu0
        %v1331 = vadd.f32 %v980, %v1330
        %v1332 = vpop.f32.mrb[0].mxu0
        %v1333 = vadd.f32 %v980, %v1332
        %1334 = vmatprep.mubr.bf16.mxu0 %v1223
        %1335 = vmatmul.mubr.bf16.gmra.mrb[0].mxu0 %v1222
        %v1336 = vpop.f32.mrb[0].mxu0
        %v1337 = vadd.f32 %v985, %v1336
        %v1338 = vpop.f32.mrb[0].mxu0
        %v1339 = vadd.f32 %v985, %v1338
        %v1340 = vpop.f32.mrb[0].mxu0
        %v1341 = vadd.f32 %v990, %v1340
        %v1342 = vpop.f32.mrb[0].mxu0
        %v1343 = vadd.f32 %v990, %v1342
        %1344 = vmatprep.mubr.bf16.mxu0 %v1225
        %1345 = vmatmul.mubr.bf16.gmra.mrb[0].mxu0 %v1224
        %v1346 = vpop.f32.mrb[0].mxu0
        %v1347 = vadd.f32 %v995, %v1346
        %v1348 = vpop.f32.mrb[0].mxu0
        %v1349 = vadd.f32 %v995, %v1348
        %v1350 = vpop.f32.mrb[0].mxu0
        %v1351 = vadd.f32 %v1000, %v1350
        %v1352 = vpop.f32.mrb[0].mxu0
        %v1353 = vadd.f32 %v1000, %v1352
        %1354 = vmatprep.mubr.bf16.mxu0 %v1227
        %1355 = vmatmul.mubr.bf16.gmra.mrb[0].mxu0 %v1226
        %v1356 = vpop.f32.mrb[0].mxu0
        %v1357 = vadd.f32 %v1005, %v1356
        %v1358 = vpop.f32.mrb[0].mxu0
        %v1359 = vadd.f32 %v1005, %v1358
        %v1360 = vpop.f32.mrb[0].mxu0
        %v1361 = vadd.f32 %v1010, %v1360
        %v1362 = vpop.f32.mrb[0].mxu0
        %v1363 = vadd.f32 %v1010, %v1362
        %1364 = vmatprep.mubr.bf16.mxu0 %v1229
        %1365 = vmatmul.mubr.bf16.gmra.mrb[0].mxu0 %v1228
        %v1366 = vpop.f32.mrb[0].mxu0
        %v1367 = vadd.f32 %v1015, %v1366
        %v1368 = vpop.f32.mrb[0].mxu0
        %v1369 = vadd.f32 %v1015, %v1368
        %v1370 = vpop.f32.mrb[0].mxu0
        %v1371 = vadd.f32 %v1020, %v1370
        %v1372 = vpop.f32.mrb[0].mxu0
        %v1373 = vadd.f32 %v1020, %v1372
        %1374 = vmatprep.mubr.bf16.mxu0 %v1231
        %1375 = vmatmul.mubr.bf16.gmra.mrb[0].mxu0 %v1230
        %v1376 = vpop.f32.mrb[0].mxu0
        %v1377 = vadd.f32 %v1025, %v1376
        %v1378 = vpop.f32.mrb[0].mxu0
        %v1379 = vadd.f32 %v1025, %v1378
        %v1380 = vpop.f32.mrb[0].mxu0
        %v1381 = vadd.f32 %v1030, %v1380
        %v1382 = vpop.f32.mrb[0].mxu0
        %v1383 = vadd.f32 %v1030, %v1382
        %1384 = vmatprep.mubr.bf16.mxu0 %v1233
        %1385 = vmatmul.mubr.bf16.gmra.mrb[0].mxu0 %v1232
        %v1386 = vpop.f32.mrb[0].mxu0
        %v1387 = vadd.f32 %v1035, %v1386
        %v1388 = vpop.f32.mrb[0].mxu0
        %v1389 = vadd.f32 %v1035, %v1388
        %v1390 = vpop.f32.mrb[0].mxu0
        %v1391 = vadd.f32 %v1040, %v1390
        %v1392 = vpop.f32.mrb[0].mxu0
        %v1393 = vadd.f32 %v1040, %v1392
        %1394 = vmatprep.mubr.bf16.mxu0 %v1235
        %1395 = vmatmul.mubr.bf16.gmra.mrb[0].mxu0 %v1234
        %v1396 = vpop.f32.mrb[0].mxu0
        %v1397 = vadd.f32 %v1045, %v1396
        %v1398 = vpop.f32.mrb[0].mxu0
        %v1399 = vadd.f32 %v1045, %v1398
        %v1400 = vpop.f32.mrb[0].mxu0
        %v1401 = vadd.f32 %v1050, %v1400
        %v1402 = vpop.f32.mrb[0].mxu0
        %v1403 = vadd.f32 %v1050, %v1402
        %1404 = vmatprep.mubr.bf16.mxu0 %v1237
        %1405 = vmatmul.mubr.bf16.gmra.mrb[0].mxu0 %v1236
        %v1406 = vpop.f32.mrb[0].mxu0
        %v1407 = vadd.f32 %v1055, %v1406
        %v1408 = vpop.f32.mrb[0].mxu0
        %v1409 = vadd.f32 %v1055, %v1408
        %v1410 = vpop.f32.mrb[0].mxu0
        %v1411 = vadd.f32 %v1060, %v1410
        %v1412 = vpop.f32.mrb[0].mxu0
        %v1413 = vadd.f32 %v1060, %v1412
        %1414 = vmatprep.mubr.bf16.mxu0 %v1239
        %1415 = vmatmul.mubr.bf16.gmra.mrb[0].mxu0 %v1238
        %v1416 = vpop.f32.mrb[0].mxu0
        %v1417 = vadd.f32 %v1065, %v1416
        %v1418 = vpop.f32.mrb[0].mxu0
        %v1419 = vadd.f32 %v1065, %v1418
        %v1420 = vpop.f32.mrb[0].mxu0
        %v1421 = vadd.f32 %v1070, %v1420
        %v1422 = vpop.f32.mrb[0].mxu0
        %v1423 = vadd.f32 %v1070, %v1422
        %1424 = vmatprep.mubr.bf16.mxu0 %v1241
        %1425 = vmatmul.mubr.bf16.gmra.mrb[0].mxu0 %v1240
        %v1426 = vpop.f32.mrb[0].mxu0
        %v1427 = vadd.f32 %v1075, %v1426
        %v1428 = vpop.f32.mrb[0].mxu0
        %v1429 = vadd.f32 %v1075, %v1428
        %v1430 = vpop.f32.mrb[0].mxu0
        %v1431 = vadd.f32 %v1080, %v1430
        %v1432 = vpop.f32.mrb[0].mxu0
        %v1433 = vadd.f32 %v1080, %v1432
        %1434 = vmatprep.mubr.bf16.mxu0 %v1243
        %1435 = vmatmul.mubr.bf16.gmra.mrb[0].mxu0 %v1242
        %v1436 = vpop.f32.mrb[0].mxu0
        %v1437 = vadd.f32 %v1085, %v1436
        %v1438 = vpop.f32.mrb[0].mxu0
        %v1439 = vadd.f32 %v1085, %v1438
        %v1440 = vpop.f32.mrb[0].mxu0
        %v1441 = vadd.f32 %v1090, %v1440
        %v1442 = vpop.f32.mrb[0].mxu0
        %v1443 = vadd.f32 %v1090, %v1442
        %1444 = vmatprep.mubr.bf16.mxu0 %v1245
        %1445 = vmatmul.mubr.bf16.gmra.mrb[0].mxu0 %v1244
        %v1446 = vpop.f32.mrb[0].mxu0
        %v1447 = vadd.f32 %v1095, %v1446
        %v1448 = vpop.f32.mrb[0].mxu0
        %v1449 = vadd.f32 %v1095, %v1448
        %v1450 = vpop.f32.mrb[0].mxu0
        %v1451 = vadd.f32 %v1100, %v1450
        %v1452 = vpop.f32.mrb[0].mxu0
        %v1453 = vadd.f32 %v1100, %v1452
        %1454 = vmatprep.mubr.bf16.mxu0 %v1247
        %1455 = vmatmul.mubr.bf16.gmra.mrb[0].mxu0 %v1246
        %v1456 = vpop.f32.mrb[0].mxu0
        %v1457 = vadd.f32 %v1105, %v1456
        %v1458 = vpop.f32.mrb[0].mxu0
        %v1459 = vadd.f32 %v1105, %v1458
        %v1460 = vpop.f32.mrb[0].mxu0
        %v1461 = vadd.f32 %v1110, %v1460
        %v1462 = vpop.f32.mrb[0].mxu0
        %v1463 = vadd.f32 %v1110, %v1462
        %1464 = vmatprep.mubr.bf16.mxu0 %v1249
        %1465 = vmatmul.mubr.bf16.gmra.mrb[0].mxu0 %v1248
        %v1466 = vpop.f32.mrb[0].mxu0
        %v1467 = vadd.f32 %v1115, %v1466
        %v1468 = vpop.f32.mrb[0].mxu0
        %v1469 = vadd.f32 %v1115, %v1468
        %v1470 = vpop.f32.mrb[0].mxu0
        %v1471 = vadd.f32 %v1120, %v1470
        %v1472 = vpop.f32.mrb[0].mxu0
        %v1473 = vadd.f32 %v1120, %v1472
        %1474 = vdwg.mxu0
        %v1475 = vmax.f32 %v1317, 0.0
        %v1476 = vmax.f32 %v1319, 0.0
        %v1477 = vmax.f32 %v1321, 0.0
        %v1478 = vmax.f32 %v1323, 0.0
        %v1479 = vmax.f32 %v1327, 0.0
        %v1480 = vmax.f32 %v1329, 0.0
        %v1481 = vmax.f32 %v1331, 0.0
        %v1482 = vmax.f32 %v1333, 0.0
        %v1483 = vmax.f32 %v1337, 0.0
        %v1484 = vmax.f32 %v1339, 0.0
        %v1485 = vmax.f32 %v1341, 0.0
        %v1486 = vmax.f32 %v1343, 0.0
        %v1487 = vmax.f32 %v1347, 0.0
        %v1488 = vmax.f32 %v1349, 0.0
        %v1489 = vmax.f32 %v1351, 0.0
        %v1490 = vmax.f32 %v1353, 0.0
        %v1491 = vmax.f32 %v1357, 0.0
        %v1492 = vmax.f32 %v1359, 0.0
        %v1493 = vmax.f32 %v1361, 0.0
        %v1494 = vmax.f32 %v1363, 0.0
        %v1495 = vmax.f32 %v1367, 0.0
        %v1496 = vmax.f32 %v1369, 0.0
        %v1497 = vmax.f32 %v1371, 0.0
        %v1498 = vmax.f32 %v1373, 0.0
        %v1499 = vmax.f32 %v1377, 0.0
        %v1500 = vmax.f32 %v1379, 0.0
        %v1501 = vmax.f32 %v1381, 0.0
        %v1502 = vmax.f32 %v1383, 0.0
        %v1503 = vmax.f32 %v1387, 0.0
        %v1504 = vmax.f32 %v1389, 0.0
        %v1505 = vmax.f32 %v1391, 0.0
        %v1506 = vmax.f32 %v1393, 0.0
        %v1507 = vmax.f32 %v1397, 0.0
        %v1508 = vmax.f32 %v1399, 0.0
        %v1509 = vmax.f32 %v1401, 0.0
        %v1510 = vmax.f32 %v1403, 0.0
        %v1511 = vmax.f32 %v1407, 0.0
        %v1512 = vmax.f32 %v1409, 0.0
        %v1513 = vmax.f32 %v1411, 0.0
        %v1514 = vmax.f32 %v1413, 0.0
        %v1515 = vmax.f32 %v1417, 0.0
        %v1516 = vmax.f32 %v1419, 0.0
        %v1517 = vmax.f32 %v1421, 0.0
        %v1518 = vmax.f32 %v1423, 0.0
        %v1519 = vmax.f32 %v1427, 0.0
        %v1520 = vmax.f32 %v1429, 0.0
        %v1521 = vmax.f32 %v1431, 0.0
        %v1522 = vmax.f32 %v1433, 0.0
        %v1523 = vmax.f32 %v1437, 0.0
        %v1524 = vmax.f32 %v1439, 0.0
        %v1525 = vmax.f32 %v1441, 0.0
        %v1526 = vmax.f32 %v1443, 0.0
        %v1527 = vmax.f32 %v1447, 0.0
        %v1528 = vmax.f32 %v1449, 0.0
        %v1529 = vmax.f32 %v1451, 0.0
        %v1530 = vmax.f32 %v1453, 0.0
        %v1531 = vmax.f32 %v1457, 0.0
        %v1532 = vmax.f32 %v1459, 0.0
        %v1533 = vmax.f32 %v1461, 0.0
        %v1534 = vmax.f32 %v1463, 0.0
        %v1535 = vmax.f32 %v1467, 0.0
        %v1536 = vmax.f32 %v1469, 0.0
        %v1537 = vmax.f32 %v1471, 0.0
        %v1538 = vmax.f32 %v1473, 0.0
        %v1539 = vld [vmem:[%s5] sm:$0xff]
        %v1540 = vld [vmem:[%s5 + $0x8] sm:$0xff]
        %v1541 = vld [vmem:[%s5 + $0x10] sm:$0xff]
        %v1542 = vld [vmem:[%s5 + $0x18] sm:$0xff]
        %v1543 = vld [vmem:[%s5 + $0x20] sm:$0xff]
        %v1544 = vld [vmem:[%s5 + $0x28] sm:$0xff]
        %v1545 = vld [vmem:[%s5 + $0x30] sm:$0xff]
        %v1546 = vld [vmem:[%s5 + $0x38] sm:$0xff]
        %v1547 = vld [vmem:[%s5 + $0x40] sm:$0xff]
        %v1548 = vld [vmem:[%s5 + $0x48] sm:$0xff]
        %v1549 = vld [vmem:[%s5 + $0x50] sm:$0xff]
        %v1550 = vld [vmem:[%s5 + $0x58] sm:$0xff]
        %v1551 = vld [vmem:[%s5 + $0x60] sm:$0xff]
        %v1552 = vld [vmem:[%s5 + $0x68] sm:$0xff]
        %v1553 = vld [vmem:[%s5 + $0x70] sm:$0xff]
        %v1554 = vld [vmem:[%s5 + $0x78] sm:$0xff]
        %v1555 = vld [vmem:[%s5 + $0x80] sm:$0xff]
        %v1556 = vld [vmem:[%s5 + $0x88] sm:$0xff]
        %v1557 = vld [vmem:[%s5 + $0x90] sm:$0xff]
        %v1558 = vld [vmem:[%s5 + $0x98] sm:$0xff]
        %v1559 = vld [vmem:[%s5 + $0xa0] sm:$0xff]
        %v1560 = vld [vmem:[%s5 + $0xa8] sm:$0xff]
        %v1561 = vld [vmem:[%s5 + $0xb0] sm:$0xff]
        %v1562 = vld [vmem:[%s5 + $0xb8] sm:$0xff]
        %v1563 = vld [vmem:[%s5 + $0xc0] sm:$0xff]
        %v1564 = vld [vmem:[%s5 + $0xc8] sm:$0xff]
        %v1565 = vld [vmem:[%s5 + $0xd0] sm:$0xff]
        %v1566 = vld [vmem:[%s5 + $0xd8] sm:$0xff]
        %v1567 = vld [vmem:[%s5 + $0xe0] sm:$0xff]
        %v1568 = vld [vmem:[%s5 + $0xe8] sm:$0xff]
        %v1569 = vld [vmem:[%s5 + $0xf0] sm:$0xff]
        %v1570 = vld [vmem:[%s5 + $0xf8] sm:$0xff]
        %1572 = vset.pattern.permute.xlu0 0
        %1573 = vperm.xlu0 %1572, %v1539
        %v1574 = vpop.permute.xlu0 %1573
        %1577 = vset.pattern.permute.xlu0 0
        %1578 = vperm.xlu0 %1577, %v1540
        %v1579 = vpop.permute.xlu0 %1578
        %1582 = vset.pattern.permute.xlu0 0
        %1583 = vperm.xlu0 %1582, %v1541
        %v1584 = vpop.permute.xlu0 %1583
        %1587 = vset.pattern.permute.xlu0 0
        %1588 = vperm.xlu0 %1587, %v1542
        %v1589 = vpop.permute.xlu0 %1588
        %1592 = vset.pattern.permute.xlu0 0
        %1593 = vperm.xlu0 %1592, %v1543
        %v1594 = vpop.permute.xlu0 %1593
        %1597 = vset.pattern.permute.xlu0 0
        %1598 = vperm.xlu0 %1597, %v1544
        %v1599 = vpop.permute.xlu0 %1598
        %1602 = vset.pattern.permute.xlu0 0
        %1603 = vperm.xlu0 %1602, %v1545
        %v1604 = vpop.permute.xlu0 %1603
        %1607 = vset.pattern.permute.xlu0 0
        %1608 = vperm.xlu0 %1607, %v1546
        %v1609 = vpop.permute.xlu0 %1608
        %1612 = vset.pattern.permute.xlu0 0
        %1613 = vperm.xlu0 %1612, %v1547
        %v1614 = vpop.permute.xlu0 %1613
        %1617 = vset.pattern.permute.xlu0 0
        %1618 = vperm.xlu0 %1617, %v1548
        %v1619 = vpop.permute.xlu0 %1618
        %1622 = vset.pattern.permute.xlu0 0
        %1623 = vperm.xlu0 %1622, %v1549
        %v1624 = vpop.permute.xlu0 %1623
        %1627 = vset.pattern.permute.xlu0 0
        %1628 = vperm.xlu0 %1627, %v1550
        %v1629 = vpop.permute.xlu0 %1628
        %1632 = vset.pattern.permute.xlu0 0
        %1633 = vperm.xlu0 %1632, %v1551
        %v1634 = vpop.permute.xlu0 %1633
        %1637 = vset.pattern.permute.xlu0 0
        %1638 = vperm.xlu0 %1637, %v1552
        %v1639 = vpop.permute.xlu0 %1638
        %1642 = vset.pattern.permute.xlu0 0
        %1643 = vperm.xlu0 %1642, %v1553
        %v1644 = vpop.permute.xlu0 %1643
        %1647 = vset.pattern.permute.xlu0 0
        %1648 = vperm.xlu0 %1647, %v1554
        %v1649 = vpop.permute.xlu0 %1648
        %1652 = vset.pattern.permute.xlu0 0
        %1653 = vperm.xlu0 %1652, %v1555
        %v1654 = vpop.permute.xlu0 %1653
        %1657 = vset.pattern.permute.xlu0 0
        %1658 = vperm.xlu0 %1657, %v1556
        %v1659 = vpop.permute.xlu0 %1658
        %1662 = vset.pattern.permute.xlu0 0
        %1663 = vperm.xlu0 %1662, %v1557
        %v1664 = vpop.permute.xlu0 %1663
        %1667 = vset.pattern.permute.xlu0 0
        %1668 = vperm.xlu0 %1667, %v1558
        %v1669 = vpop.permute.xlu0 %1668
        %1672 = vset.pattern.permute.xlu0 0
        %1673 = vperm.xlu0 %1672, %v1559
        %v1674 = vpop.permute.xlu0 %1673
        %1677 = vset.pattern.permute.xlu0 0
        %1678 = vperm.xlu0 %1677, %v1560
        %v1679 = vpop.permute.xlu0 %1678
        %1682 = vset.pattern.permute.xlu0 0
        %1683 = vperm.xlu0 %1682, %v1561
        %v1684 = vpop.permute.xlu0 %1683
        %1687 = vset.pattern.permute.xlu0 0
        %1688 = vperm.xlu0 %1687, %v1562
        %v1689 = vpop.permute.xlu0 %1688
        %1692 = vset.pattern.permute.xlu0 0
        %1693 = vperm.xlu0 %1692, %v1563
        %v1694 = vpop.permute.xlu0 %1693
        %1697 = vset.pattern.permute.xlu0 0
        %1698 = vperm.xlu0 %1697, %v1564
        %v1699 = vpop.permute.xlu0 %1698
        %1702 = vset.pattern.permute.xlu0 0
        %1703 = vperm.xlu0 %1702, %v1565
        %v1704 = vpop.permute.xlu0 %1703
        %1707 = vset.pattern.permute.xlu0 0
        %1708 = vperm.xlu0 %1707, %v1566
        %v1709 = vpop.permute.xlu0 %1708
        %1712 = vset.pattern.permute.xlu0 0
        %1713 = vperm.xlu0 %1712, %v1567
        %v1714 = vpop.permute.xlu0 %1713
        %1717 = vset.pattern.permute.xlu0 0
        %1718 = vperm.xlu0 %1717, %v1568
        %v1719 = vpop.permute.xlu0 %1718
        %1722 = vset.pattern.permute.xlu0 0
        %1723 = vperm.xlu0 %1722, %v1569
        %v1724 = vpop.permute.xlu0 %1723
        %1727 = vset.pattern.permute.xlu0 0
        %1728 = vperm.xlu0 %1727, %v1570
        %v1729 = vpop.permute.xlu0 %1728
        %v1731 = vmul.f32 %v1475, %v1574
        %v1732 = vmul.f32 %v1476, %v1574
        %v1733 = vmul.f32 %v1477, %v1579
        %v1734 = vmul.f32 %v1478, %v1579
        %v1735 = vmul.f32 %v1479, %v1584
        %v1736 = vmul.f32 %v1480, %v1584
        %v1737 = vmul.f32 %v1481, %v1589
        %v1738 = vmul.f32 %v1482, %v1589
        %v1739 = vmul.f32 %v1483, %v1594
        %v1740 = vmul.f32 %v1484, %v1594
        %v1741 = vmul.f32 %v1485, %v1599
        %v1742 = vmul.f32 %v1486, %v1599
        %v1743 = vmul.f32 %v1487, %v1604
        %v1744 = vmul.f32 %v1488, %v1604
        %v1745 = vmul.f32 %v1489, %v1609
        %v1746 = vmul.f32 %v1490, %v1609
        %v1747 = vmul.f32 %v1491, %v1614
        %v1748 = vmul.f32 %v1492, %v1614
        %v1749 = vmul.f32 %v1493, %v1619
        %v1750 = vmul.f32 %v1494, %v1619
        %v1751 = vmul.f32 %v1495, %v1624
        %v1752 = vmul.f32 %v1496, %v1624
        %v1753 = vmul.f32 %v1497, %v1629
        %v1754 = vmul.f32 %v1498, %v1629
        %v1755 = vmul.f32 %v1499, %v1634
        %v1756 = vmul.f32 %v1500, %v1634
        %v1757 = vmul.f32 %v1501, %v1639
        %v1758 = vmul.f32 %v1502, %v1639
        %v1759 = vmul.f32 %v1503, %v1644
        %v1760 = vmul.f32 %v1504, %v1644
        %v1761 = vmul.f32 %v1505, %v1649
        %v1762 = vmul.f32 %v1506, %v1649
        %v1763 = vmul.f32 %v1507, %v1654
        %v1764 = vmul.f32 %v1508, %v1654
        %v1765 = vmul.f32 %v1509, %v1659
        %v1766 = vmul.f32 %v1510, %v1659
        %v1767 = vmul.f32 %v1511, %v1664
        %v1768 = vmul.f32 %v1512, %v1664
        %v1769 = vmul.f32 %v1513, %v1669
        %v1770 = vmul.f32 %v1514, %v1669
        %v1771 = vmul.f32 %v1515, %v1674
        %v1772 = vmul.f32 %v1516, %v1674
        %v1773 = vmul.f32 %v1517, %v1679
        %v1774 = vmul.f32 %v1518, %v1679
        %v1775 = vmul.f32 %v1519, %v1684
        %v1776 = vmul.f32 %v1520, %v1684
        %v1777 = vmul.f32 %v1521, %v1689
        %v1778 = vmul.f32 %v1522, %v1689
        %v1779 = vmul.f32 %v1523, %v1694
        %v1780 = vmul.f32 %v1524, %v1694
        %v1781 = vmul.f32 %v1525, %v1699
        %v1782 = vmul.f32 %v1526, %v1699
        %v1783 = vmul.f32 %v1527, %v1704
        %v1784 = vmul.f32 %v1528, %v1704
        %v1785 = vmul.f32 %v1529, %v1709
        %v1786 = vmul.f32 %v1530, %v1709
        %v1787 = vmul.f32 %v1531, %v1714
        %v1788 = vmul.f32 %v1532, %v1714
        %v1789 = vmul.f32 %v1533, %v1719
        %v1790 = vmul.f32 %v1534, %v1719
        %v1791 = vmul.f32 %v1535, %v1724
        %v1792 = vmul.f32 %v1536, %v1724
        %v1793 = vmul.f32 %v1537, %v1729
        %v1794 = vmul.f32 %v1538, %v1729
        %v1795 = vadd.f32 %v1731, %v1733
        %v1796 = vadd.f32 %v1795, %v1735
        %v1797 = vadd.f32 %v1796, %v1737
        %v1798 = vadd.f32 %v1797, %v1739
        %v1799 = vadd.f32 %v1798, %v1741
        %v1800 = vadd.f32 %v1799, %v1743
        %v1801 = vadd.f32 %v1800, %v1745
        %v1802 = vadd.f32 %v1801, %v1747
        %v1803 = vadd.f32 %v1802, %v1749
        %v1804 = vadd.f32 %v1803, %v1751
        %v1805 = vadd.f32 %v1804, %v1753
        %v1806 = vadd.f32 %v1805, %v1755
        %v1807 = vadd.f32 %v1806, %v1757
        %v1808 = vadd.f32 %v1807, %v1759
        %v1809 = vadd.f32 %v1808, %v1761
        %v1810 = vadd.f32 %v1809, %v1763
        %v1811 = vadd.f32 %v1810, %v1765
        %v1812 = vadd.f32 %v1811, %v1767
        %v1813 = vadd.f32 %v1812, %v1769
        %v1814 = vadd.f32 %v1813, %v1771
        %v1815 = vadd.f32 %v1814, %v1773
        %v1816 = vadd.f32 %v1815, %v1775
        %v1817 = vadd.f32 %v1816, %v1777
        %v1818 = vadd.f32 %v1817, %v1779
        %v1819 = vadd.f32 %v1818, %v1781
        %v1820 = vadd.f32 %v1819, %v1783
        %v1821 = vadd.f32 %v1820, %v1785
        %v1822 = vadd.f32 %v1821, %v1787
        %v1823 = vadd.f32 %v1822, %v1789
        %v1824 = vadd.f32 %v1823, %v1791
        %v1825 = vadd.f32 %v1824, %v1793
        %v1826 = vrot.slane %v1825, 4
        %v1827 = vadd.f32 %v1825, %v1826
        %v1828 = vrot.slane %v1827, 2
        %v1829 = vadd.f32 %v1827, %v1828
        %v1830 = vrot.slane %v1829, 1
        %v1831 = vadd.f32 %v1829, %v1830
        %v1832 = vadd.f32 %v1732, %v1734
        %v1833 = vadd.f32 %v1832, %v1736
        %v1834 = vadd.f32 %v1833, %v1738
        %v1835 = vadd.f32 %v1834, %v1740
        %v1836 = vadd.f32 %v1835, %v1742
        %v1837 = vadd.f32 %v1836, %v1744
        %v1838 = vadd.f32 %v1837, %v1746
        %v1839 = vadd.f32 %v1838, %v1748
        %v1840 = vadd.f32 %v1839, %v1750
        %v1841 = vadd.f32 %v1840, %v1752
        %v1842 = vadd.f32 %v1841, %v1754
        %v1843 = vadd.f32 %v1842, %v1756
        %v1844 = vadd.f32 %v1843, %v1758
        %v1845 = vadd.f32 %v1844, %v1760
        %v1846 = vadd.f32 %v1845, %v1762
        %v1847 = vadd.f32 %v1846, %v1764
        %v1848 = vadd.f32 %v1847, %v1766
        %v1849 = vadd.f32 %v1848, %v1768
        %v1850 = vadd.f32 %v1849, %v1770
        %v1851 = vadd.f32 %v1850, %v1772
        %v1852 = vadd.f32 %v1851, %v1774
        %v1853 = vadd.f32 %v1852, %v1776
        %v1854 = vadd.f32 %v1853, %v1778
        %v1855 = vadd.f32 %v1854, %v1780
        %v1856 = vadd.f32 %v1855, %v1782
        %v1857 = vadd.f32 %v1856, %v1784
        %v1858 = vadd.f32 %v1857, %v1786
        %v1859 = vadd.f32 %v1858, %v1788
        %v1860 = vadd.f32 %v1859, %v1790
        %v1861 = vadd.f32 %v1860, %v1792
        %v1862 = vadd.f32 %v1861, %v1794
        %v1863 = vrot.slane %v1862, 4
        %v1864 = vadd.f32 %v1862, %v1863
        %v1865 = vrot.slane %v1864, 2
        %v1866 = vadd.f32 %v1864, %v1865
        %v1867 = vrot.slane %v1866, 1
        %v1868 = vadd.f32 %v1866, %v1867
        %s1869 = sld [smem:[#allocation2]]
        %v1870 = vstv %s1869
        %v1871 = vadd.f32 %v1831, %v1870
        %v1872 = vadd.f32 %v1868, %v1870
        %v1875 = vcombine.low %v1871, %v1872
        %v1877 = vunpack.c.l.s4 1966171168
        %v1878 = vunpack.c.0.s8 %v1877
        %v1879 = vlaneseq
        %v1880 = vshrl.u32 %v1879, 7
        %v1881 = vsub.s32 %v1878, %v1880
        %v1882 = vrot.slane %v1875, %v1881
        %v1884 = vunpack.c.l.s4 1966171168
        %v1885 = vunpack.c.0.s8 %v1884
        %v1886 = vlaneseq
        %v1887 = vshrl.u32 %v1886, 7
        %v1888 = vsub.s32 %v1885, %v1887
        %v1889 = vrot.slane %v1882, %v1888
        %v1891 = vlaneseq
        %vm1892 = vcmp.ge.s32.totalorder %v1891, 0
        %vm1893 = vcmp.lt.s32.totalorder %v1891, 256
        %vm1894 = vmand %vm1892, %vm1893
        %1895 = vst.msk [vmem:[%s271] sm:$0x3] %vm1894, %v1889
        %s1896 = sand.u32 %s182, 1
        %s1897 = scalar_lea.sflag [#allocation4], %s1896
        %s1898 = sand.u32 %s182, 1
        %s1899 = smul.addr %s1898, 2
        %s1900 = scalar_lea.vmem [#allocation3], %s1899
        // Predicated region
        $region49: #{tpu_custom_call.1} parent=47 // pred_check
          %p1901 = pneg %p192
        $region50: #{tpu_custom_call.1} parent=47 // pred_check_branch
          %1903 = sbr.rel (%p1901) target = $region52
        $region51: #{tpu_custom_call.1} parent=47 // pred_region
          %s1904 = smul.u32 2, %s22
          %s1906 = ssub.s32 32, 32
          %1907 = vsyncadd %s1897, %s1906
          %s1908 = smul.addr %s1904, 16
          %s1909 = scalar_lea.hbm %s7, %s1908
          %s1911 = sshll.u32 %s1900, 4
          %s1912 = int_to_ptr.vmem [resolvable:$true] %s1911
          %1914 = dma.vmem_to_hbm [thread:$0]  %s1912, 32, %s1909, %s1897
        $region52: #{tpu_custom_call.1} parent=47 // pred_fallthru
          _
      $region48: #{tpu_custom_call.1} parent=5 // pred_fallthru
        _
      %p1915 = scmp.le.s32.totalorder 2, %s17
      // Predicated region
      $region53: #{tpu_custom_call.1} parent=5 // pred_check
        %p1916 = pneg %p1915
      $region54: #{tpu_custom_call.1} parent=5 // pred_check_branch
        %1918 = sbr.rel (%p1916) target = $region56
      $region55: #{tpu_custom_call.1} parent=5 // pred_region
        %s1919 = ssub.s32 %s17, 2
        // Predicated region
        $region57: #{tpu_custom_call.1} parent=55 // pred_check
          %p1920 = pneg %p198
        $region58: #{tpu_custom_call.1} parent=55 // pred_check_branch
          %1922 = sbr.rel (%p1920) target = $region60
        $region59: #{tpu_custom_call.1} parent=55 // pred_region
          %s1923 = sand.u32 %s183, 1
          %s1924 = scalar_lea.sflag [#allocation4], %s1923
          %s1925 = sand.u32 %s183, 1
          %s1926 = smul.addr %s1925, 2
          %s1927 = scalar_lea.vmem [#allocation3], %s1926
          %1928 = dma.done %s1924, 32
        $region60: #{tpu_custom_call.1} parent=55 // pred_fallthru
          _
      $region56: #{tpu_custom_call.1} parent=5 // pred_fallthru
        _
    $region6: #{tpu_custom_call.1} parent=1 // loop_footer
      %s21 = sadd.s32 1, %s17
    $region7: #{tpu_custom_call.1} parent=1 // loop_footer_branch
      %16 = sbr.rel target = $region3
    $region8: #{tpu_custom_call.1} parent=1 // loop_exit
      _
    %1929 = vsyncpa [#allocation4], 1
    %s1930 = scalar_lea.sflag [#allocation4], 1
    %1931 = vsyncpa %s1930, 1

</llo_original>
